<compile_context>
chip_gen: v7x
topology: tpu7x:2x2x1
jax: 0.10.0
libtpu: 0.0.40
codegen_flags: <defaults>
</compile_context>

<pallas_src>
import jax
import jax.numpy as jnp
from jax import lax
from jax.experimental import pallas as pl
from jax.experimental.pallas import tpu as pltpu

# ---- model hyperparameters (small, consistent with the module) ----
B = 2          # batch
S = 8          # sequence length
H = 32         # hidden_size
FFN = 64       # ffn_size
NH = 4         # n_heads
AD = H // NH   # att_size per head
SCALE = AD ** (-0.5)
LN_EPS = 1e-5
BS = B * S


def _layer_norm(v, g, b):
    mu = jnp.mean(v, axis=-1, keepdims=True)
    var = jnp.mean((v - mu) ** 2, axis=-1, keepdims=True)
    return (v - mu) * lax.rsqrt(var + LN_EPS) * g + b


def encoder_layer_kernel(x_ref, bias_ref, wattn_ref, w1_ref, w2_ref, vec_ref, out_ref):
    x = x_ref[...]                       # (B*S, H)
    bias = bias_ref[...]                 # (B*NH, S, S)
    wa = wattn_ref[...]                  # (H, 4H) = [wq | wk | wv | wo]
    vecs = vec_ref[...]                  # (3, 4H) packed vector params

    # unpack the vector slab with static value slices (free views of VMEM data)
    ln1_g = vecs[0:1, 0:H]
    ln1_b = vecs[0:1, H:2 * H]
    ln2_g = vecs[0:1, 2 * H:3 * H]
    ln2_b = vecs[0:1, 3 * H:4 * H]
    bqkv = vecs[1:2, 0:3 * H]
    bo = vecs[1:2, 3 * H:4 * H]
    b1 = vecs[2:3, 0:FFN]
    b2 = vecs[2:3, FFN:FFN + H]

    # ---- self_attention_norm ----
    xn = _layer_norm(x, ln1_g, ln1_b)    # (B*S, H)

    # ---- fused QKV projection: one lane-dense (32x128) MXU push.
    # Columns 3H:4H hold xn@wo, which we simply discard (free on the MXU).
    qkvo = jnp.dot(xn, wa, preferred_element_type=jnp.float32)   # (B*S, 4H)
    qkv = qkvo[:, 0:3 * H] + bqkv                                # (B*S, 3H)

    q = qkv[:, 0:H] * SCALE
    k = qkv[:, H:2 * H]
    v = qkv[:, 2 * H:3 * H]

    def to_heads(t):
        # (B*S, NH*AD) -> (B*NH, S, AD); head-major batch, matching attn_bias layout
        parts = [t[:, h * AD:(h + 1) * AD].reshape(B, 1, S, AD) for h in range(NH)]
        return jnp.concatenate(parts, axis=1).reshape(B * NH, S, AD)

    qh = to_heads(q)
    kh = to_heads(k)
    vh = to_heads(v)

    # ---- head-batched attention: two batched contractions, no explicit k transpose
    s = jnp.einsum("bqd,bkd->bqk", qh, kh, preferred_element_type=jnp.float32) + bias
    s = s - jnp.max(s, axis=-1, keepdims=True)
    p = jnp.exp(s)
    # exact reciprocal: approx=True (EUP vrcp) risks the 1e-4 tolerance; win is tiny here
    p = p * pl.reciprocal(jnp.sum(p, axis=-1, keepdims=True), approx=False)
    att_h = jnp.einsum("bqk,bkd->bqd", p, vh,
                       preferred_element_type=jnp.float32)       # (B*NH, S, AD)

    # (B*NH, S, AD) -> (B*S, H)
    att4 = att_h.reshape(B, NH, S, AD)
    att = jnp.concatenate([att4[:, h].reshape(BS, AD) for h in range(NH)], axis=-1)

    wo = wa[:, 3 * H:4 * H]
    y = jnp.dot(att, wo, preferred_element_type=jnp.float32) + bo
    # attention dropout: identity (eval)
    x1 = xn + y            # residual onto the *normed* input (module semantics)

    # ---- ffn_norm + FFN with exact (erf-based) GELU ----
    x2 = _layer_norm(x1, ln2_g, ln2_b)
    h1 = jnp.dot(x2, w1_ref[...], preferred_element_type=jnp.float32) + b1
    g = 0.5 * h1 * (1.0 + lax.erf(h1 * jnp.float32(0.7071067811865476)))
    h2 = jnp.dot(g, w2_ref[...], preferred_element_type=jnp.float32) + b2
    # ffn dropout: identity (eval)

    out_ref[...] = (x2 + h2).astype(out_ref.dtype)


def pack_params(p):
    """One-time packing of the 16 module parameters into 4 kernel inputs."""
    # (H, 4H) = [wq | wk | wv | wo]
    w_attn = jnp.concatenate([p["wq"], p["wk"], p["wv"], p["wo"]], axis=1)

    def _row(*parts):
        vvec = jnp.concatenate([jnp.reshape(a, (-1,)).astype(jnp.float32) for a in parts])
        return jnp.pad(vvec, (0, 4 * H - vvec.shape[0]))

    vecs = jnp.stack([
        _row(p["ln1_g"], p["ln1_b"], p["ln2_g"], p["ln2_b"]),   # row 0: LN params
        _row(p["bq"], p["bk"], p["bv"], p["bo"]),               # row 1: [bqkv | bo]
        _row(p["b1"], p["b2"]),                                 # row 2: [b1 | b2 | pad]
    ])                                                          # (3, 128)
    return {"w_attn": w_attn, "w1": p["w1"], "w2": p["w2"], "vecs": vecs}


def encoder_layer(x, attn_bias, packed):
    """x: (B,S,H) f32, attn_bias: (B,NH,S,S) f32, packed: output of pack_params."""
    x2d = x.reshape(BS, H)
    bias3 = attn_bias.reshape(B * NH, S, S)

    grid_spec = pltpu.PrefetchScalarGridSpec(
        num_scalar_prefetch=0,
        grid=(1,),                       # single invocation: whole problem fits VMEM
        in_specs=[
            pl.BlockSpec((BS, H), lambda i: (0, 0)),             # activations
            pl.BlockSpec((B * NH, S, S), lambda i: (0, 0, 0)),   # attn bias
            pl.BlockSpec((H, 4 * H), lambda i: (0, 0)),          # fused attn weights
            pl.BlockSpec((H, FFN), lambda i: (0, 0)),            # w1
            pl.BlockSpec((FFN, H), lambda i: (0, 0)),            # w2
            pl.BlockSpec((3, 4 * H), lambda i: (0, 0)),          # packed vectors
        ],
        out_specs=pl.BlockSpec((BS, H), lambda i: (0, 0)),
    )
    out2d = pl.pallas_call(
        encoder_layer_kernel,
        out_shape=jax.ShapeDtypeStruct((BS, H), jnp.float32),
        grid_spec=grid_spec,
        compiler_params=pltpu.CompilerParams(dimension_semantics=("arbitrary",)),
    )(x2d, bias3, packed["w_attn"], packed["w1"], packed["w2"], packed["vecs"])
    return out2d.reshape(B, S, H)


def encoder_layer_reference(x, attn_bias, p):
    """Pure-JAX reference mirroring the PyTorch forward (eval mode), unpacked params."""
    def ln(v, g, b):
        mu = v.mean(-1, keepdims=True)
        var = ((v - mu) ** 2).mean(-1, keepdims=True)
        return (v - mu) / jnp.sqrt(var + LN_EPS) * g + b

    xn = ln(x, p["ln1_g"], p["ln1_b"])
    q = (xn @ p["wq"] + p["bq"]).reshape(B, S, NH, AD).transpose(0, 2, 1, 3)
    k = (xn @ p["wk"] + p["bk"]).reshape(B, S, NH, AD).transpose(0, 2, 1, 3)
    v = (xn @ p["wv"] + p["bv"]).reshape(B, S, NH, AD).transpose(0, 2, 1, 3)
    s = jnp.einsum("bhqd,bhkd->bhqk", q * SCALE, k) + attn_bias
    a = jax.nn.softmax(s, axis=-1)
    o = jnp.einsum("bhqk,bhkd->bhqd", a, v).transpose(0, 2, 1, 3).reshape(B, S, H)
    y = o @ p["wo"] + p["bo"]
    x1 = xn + y
    x2 = ln(x1, p["ln2_g"], p["ln2_b"])
    h1 = x2 @ p["w1"] + p["b1"]
    g = 0.5 * h1 * (1.0 + lax.erf(h1 / jnp.sqrt(2.0)))
    h2 = g @ p["w2"] + p["b2"]
    return x2 + h2


def init_params(key):
    ks = jax.random.split(key, 10)
    f = lambda k, shape, scale=0.05: (scale * jax.random.normal(k, shape)).astype(jnp.float32)
    return {
        "ln1_g": jnp.ones((1, H), jnp.float32),
        "ln1_b": jnp.zeros((1, H), jnp.float32),
        "wq": f(ks[0], (H, H)), "bq": f(ks[1], (1, H), 0.01),
        "wk": f(ks[2], (H, H)), "bk": f(ks[3], (1, H), 0.01),
        "wv": f(ks[4], (H, H)), "bv": f(ks[5], (1, H), 0.01),
        "wo": f(ks[6], (H, H)), "bo": jnp.zeros((1, H), jnp.float32),
        "ln2_g": jnp.ones((1, H), jnp.float32),
        "ln2_b": jnp.zeros((1, H), jnp.float32),
        "w1": f(ks[7], (H, FFN)), "b1": f(ks[8], (1, FFN), 0.01),
        "w2": f(ks[9], (FFN, H)), "b2": jnp.zeros((1, H), jnp.float32),
    }


if __name__ == "__main__":
    key = jax.random.PRNGKey(0)
    kx, kb, kp = jax.random.split(key, 3)
    x = jax.random.normal(kx, (B, S, H), dtype=jnp.float32)
    attn_bias = 0.1 * jax.random.normal(kb, (B, NH, S, S), dtype=jnp.float32)
    params = init_params(kp)
    packed = pack_params(params)          # one-time parameter packing (outside kernel)

    out = encoder_layer(x, attn_bias, packed)
    out = jax.block_until_ready(out)

    ref = encoder_layer_reference(x, attn_bias, params)
    assert out.shape == (B, S, H)
    assert jnp.allclose(out, ref, atol=1e-4, rtol=1e-4), "mismatch vs JAX reference"
    print("KERNEL_OK")
</pallas_src>

<mosaic_0001>
module attributes {stable_mosaic.version = 11 : i64} {
  func.func @encoder_layer_kernel(%arg0: i32, %arg1: memref<16x32xf32, #tpu.memory_space<vmem>>, %arg2: memref<8x8x8xf32, #tpu.memory_space<vmem>>, %arg3: memref<32x128xf32, #tpu.memory_space<vmem>>, %arg4: memref<32x64xf32, #tpu.memory_space<vmem>>, %arg5: memref<64x32xf32, #tpu.memory_space<vmem>>, %arg6: memref<3x128xf32, #tpu.memory_space<vmem>>, %arg7: memref<16x32xf32, #tpu.memory_space<vmem>>) attributes {dimension_semantics = [#tpu.dimension_semantics<arbitrary>], iteration_bounds = array<i64: 1>, scalar_prefetch = 0 : i64, scratch_operands = 0 : i64, tpu.core_type = #tpu.core_type<tc>, window_params = [{pipeline_mode = #tpu.pipeline_mode<synchronous>, transform_indices = @transform_0, window_bounds = array<i64: 16, 32>}, {pipeline_mode = #tpu.pipeline_mode<synchronous>, transform_indices = @transform_1, window_bounds = array<i64: 8, 8, 8>}, {pipeline_mode = #tpu.pipeline_mode<synchronous>, transform_indices = @transform_2, window_bounds = array<i64: 32, 128>}, {pipeline_mode = #tpu.pipeline_mode<synchronous>, transform_indices = @transform_3, window_bounds = array<i64: 32, 64>}, {pipeline_mode = #tpu.pipeline_mode<synchronous>, transform_indices = @transform_4, window_bounds = array<i64: 64, 32>}, {pipeline_mode = #tpu.pipeline_mode<synchronous>, transform_indices = @transform_5, window_bounds = array<i64: 3, 128>}, {pipeline_mode = #tpu.pipeline_mode<synchronous>, transform_indices = @transform_6, window_bounds = array<i64: 16, 32>}]} {
    %c0 = arith.constant 0 : index
    %c0_0 = arith.constant 0 : index
    %0 = vector.load %arg1[%c0, %c0_0] : memref<16x32xf32, #tpu.memory_space<vmem>>, vector<16x32xf32>
    %c0_1 = arith.constant 0 : index
    %c0_2 = arith.constant 0 : index
    %c0_3 = arith.constant 0 : index
    %1 = vector.load %arg2[%c0_1, %c0_2, %c0_3] : memref<8x8x8xf32, #tpu.memory_space<vmem>>, vector<8x8x8xf32>
    %c0_4 = arith.constant 0 : index
    %c0_5 = arith.constant 0 : index
    %2 = vector.load %arg3[%c0_4, %c0_5] : memref<32x128xf32, #tpu.memory_space<vmem>>, vector<32x128xf32>
    %c0_6 = arith.constant 0 : index
    %c0_7 = arith.constant 0 : index
    %3 = vector.load %arg6[%c0_6, %c0_7] : memref<3x128xf32, #tpu.memory_space<vmem>>, vector<3x128xf32>
    %4 = vector.extract_strided_slice %3 {offsets = [0, 0], sizes = [1, 32], strides = [1, 1]} : vector<3x128xf32> to vector<1x32xf32>
    %5 = vector.extract_strided_slice %3 {offsets = [0, 32], sizes = [1, 32], strides = [1, 1]} : vector<3x128xf32> to vector<1x32xf32>
    %6 = vector.extract_strided_slice %3 {offsets = [0, 64], sizes = [1, 32], strides = [1, 1]} : vector<3x128xf32> to vector<1x32xf32>
    %7 = vector.extract_strided_slice %3 {offsets = [0, 96], sizes = [1, 32], strides = [1, 1]} : vector<3x128xf32> to vector<1x32xf32>
    %8 = vector.extract_strided_slice %3 {offsets = [1, 0], sizes = [1, 96], strides = [1, 1]} : vector<3x128xf32> to vector<1x96xf32>
    %9 = vector.extract_strided_slice %3 {offsets = [1, 96], sizes = [1, 32], strides = [1, 1]} : vector<3x128xf32> to vector<1x32xf32>
    %10 = vector.extract_strided_slice %3 {offsets = [2, 0], sizes = [1, 64], strides = [1, 1]} : vector<3x128xf32> to vector<1x64xf32>
    %11 = vector.extract_strided_slice %3 {offsets = [2, 64], sizes = [1, 32], strides = [1, 1]} : vector<3x128xf32> to vector<1x32xf32>
    %cst = arith.constant dense<0.000000e+00> : vector<16xf32>
    %12 = vector.multi_reduction <add>, %0, %cst [1] : vector<16x32xf32> to vector<16xf32>
    %13 = vector.shape_cast %12 : vector<16xf32> to vector<16x1xf32>
    %cst_8 = arith.constant 3.200000e+01 : f32
    %14 = vector.broadcast %cst_8 : f32 to vector<16x1xf32>
    %15 = arith.divf %13, %14 : vector<16x1xf32>
    %16 = vector.broadcast %15 : vector<16x1xf32> to vector<16x32xf32>
    %17 = arith.subf %0, %16 : vector<16x32xf32>
    %18 = arith.mulf %17, %17 : vector<16x32xf32>
    %cst_9 = arith.constant dense<0.000000e+00> : vector<16xf32>
    %19 = vector.multi_reduction <add>, %18, %cst_9 [1] : vector<16x32xf32> to vector<16xf32>
    %20 = vector.shape_cast %19 : vector<16xf32> to vector<16x1xf32>
    %cst_10 = arith.constant 3.200000e+01 : f32
    %21 = vector.broadcast %cst_10 : f32 to vector<16x1xf32>
    %22 = arith.divf %20, %21 : vector<16x1xf32>
    %23 = vector.broadcast %15 : vector<16x1xf32> to vector<16x32xf32>
    %24 = arith.subf %0, %23 : vector<16x32xf32>
    %cst_11 = arith.constant 9.99999974E-6 : f32
    %25 = vector.broadcast %cst_11 : f32 to vector<16x1xf32>
    %26 = arith.addf %22, %25 : vector<16x1xf32>
    %27 = math.rsqrt %26 : vector<16x1xf32>
    %28 = vector.broadcast %27 : vector<16x1xf32> to vector<16x32xf32>
    %29 = arith.mulf %24, %28 : vector<16x32xf32>
    %30 = vector.broadcast %4 : vector<1x32xf32> to vector<16x32xf32>
    %31 = arith.mulf %29, %30 : vector<16x32xf32>
    %32 = vector.broadcast %5 : vector<1x32xf32> to vector<16x32xf32>
    %33 = arith.addf %31, %32 : vector<16x32xf32>
    %cst_12 = arith.constant dense<0.000000e+00> : vector<16x128xf32>
    %34 = tpu.matmul %33, %2, %cst_12 {dimension_numbers = #tpu.dot_dimension_numbers<[1], [0], [0], [1], [0, 0, 1, 1], [], []>} : vector<16x32xf32>, vector<32x128xf32>, vector<16x128xf32> -> vector<16x128xf32>
    %35 = vector.extract_strided_slice %34 {offsets = [0, 0], sizes = [16, 96], strides = [1, 1]} : vector<16x128xf32> to vector<16x96xf32>
    %36 = vector.broadcast %8 : vector<1x96xf32> to vector<16x96xf32>
    %37 = arith.addf %35, %36 : vector<16x96xf32>
    %38 = vector.extract_strided_slice %37 {offsets = [0, 0], sizes = [16, 32], strides = [1, 1]} : vector<16x96xf32> to vector<16x32xf32>
    %cst_13 = arith.constant 0.353553385 : f32
    %39 = vector.broadcast %cst_13 : f32 to vector<16x32xf32>
    %40 = arith.mulf %38, %39 : vector<16x32xf32>
    %41 = vector.extract_strided_slice %37 {offsets = [0, 32], sizes = [16, 32], strides = [1, 1]} : vector<16x96xf32> to vector<16x32xf32>
    %42 = vector.extract_strided_slice %37 {offsets = [0, 64], sizes = [16, 32], strides = [1, 1]} : vector<16x96xf32> to vector<16x32xf32>
    %43 = vector.extract_strided_slice %40 {offsets = [0, 0], sizes = [16, 8], strides = [1, 1]} : vector<16x32xf32> to vector<16x8xf32>
    %44 = vector.shape_cast %43 : vector<16x8xf32> to vector<2x1x8x8xf32>
    %45 = vector.extract_strided_slice %40 {offsets = [0, 8], sizes = [16, 8], strides = [1, 1]} : vector<16x32xf32> to vector<16x8xf32>
    %46 = vector.shape_cast %45 : vector<16x8xf32> to vector<2x1x8x8xf32>
    %47 = vector.extract_strided_slice %40 {offsets = [0, 16], sizes = [16, 8], strides = [1, 1]} : vector<16x32xf32> to vector<16x8xf32>
    %48 = vector.shape_cast %47 : vector<16x8xf32> to vector<2x1x8x8xf32>
    %49 = vector.extract_strided_slice %40 {offsets = [0, 24], sizes = [16, 8], strides = [1, 1]} : vector<16x32xf32> to vector<16x8xf32>
    %50 = vector.shape_cast %49 : vector<16x8xf32> to vector<2x1x8x8xf32>
    %51 = tpu.concatenate %44, %46, %48, %50 in 1 : vector<2x1x8x8xf32>, vector<2x1x8x8xf32>, vector<2x1x8x8xf32>, vector<2x1x8x8xf32> -> vector<2x4x8x8xf32>
    %52 = vector.shape_cast %51 : vector<2x4x8x8xf32> to vector<8x8x8xf32>
    %53 = vector.extract_strided_slice %41 {offsets = [0, 0], sizes = [16, 8], strides = [1, 1]} : vector<16x32xf32> to vector<16x8xf32>
    %54 = vector.shape_cast %53 : vector<16x8xf32> to vector<2x1x8x8xf32>
    %55 = vector.extract_strided_slice %41 {offsets = [0, 8], sizes = [16, 8], strides = [1, 1]} : vector<16x32xf32> to vector<16x8xf32>
    %56 = vector.shape_cast %55 : vector<16x8xf32> to vector<2x1x8x8xf32>
    %57 = vector.extract_strided_slice %41 {offsets = [0, 16], sizes = [16, 8], strides = [1, 1]} : vector<16x32xf32> to vector<16x8xf32>
    %58 = vector.shape_cast %57 : vector<16x8xf32> to vector<2x1x8x8xf32>
    %59 = vector.extract_strided_slice %41 {offsets = [0, 24], sizes = [16, 8], strides = [1, 1]} : vector<16x32xf32> to vector<16x8xf32>
    %60 = vector.shape_cast %59 : vector<16x8xf32> to vector<2x1x8x8xf32>
    %61 = tpu.concatenate %54, %56, %58, %60 in 1 : vector<2x1x8x8xf32>, vector<2x1x8x8xf32>, vector<2x1x8x8xf32>, vector<2x1x8x8xf32> -> vector<2x4x8x8xf32>
    %62 = vector.shape_cast %61 : vector<2x4x8x8xf32> to vector<8x8x8xf32>
    %63 = vector.extract_strided_slice %42 {offsets = [0, 0], sizes = [16, 8], strides = [1, 1]} : vector<16x32xf32> to vector<16x8xf32>
    %64 = vector.shape_cast %63 : vector<16x8xf32> to vector<2x1x8x8xf32>
    %65 = vector.extract_strided_slice %42 {offsets = [0, 8], sizes = [16, 8], strides = [1, 1]} : vector<16x32xf32> to vector<16x8xf32>
    %66 = vector.shape_cast %65 : vector<16x8xf32> to vector<2x1x8x8xf32>
    %67 = vector.extract_strided_slice %42 {offsets = [0, 16], sizes = [16, 8], strides = [1, 1]} : vector<16x32xf32> to vector<16x8xf32>
    %68 = vector.shape_cast %67 : vector<16x8xf32> to vector<2x1x8x8xf32>
    %69 = vector.extract_strided_slice %42 {offsets = [0, 24], sizes = [16, 8], strides = [1, 1]} : vector<16x32xf32> to vector<16x8xf32>
    %70 = vector.shape_cast %69 : vector<16x8xf32> to vector<2x1x8x8xf32>
    %71 = tpu.concatenate %64, %66, %68, %70 in 1 : vector<2x1x8x8xf32>, vector<2x1x8x8xf32>, vector<2x1x8x8xf32>, vector<2x1x8x8xf32> -> vector<2x4x8x8xf32>
    %72 = vector.shape_cast %71 : vector<2x4x8x8xf32> to vector<8x8x8xf32>
    "tpu.trace_start"() <{level = 10 : i32, message = "bqd,bkd->bqk"}> : () -> ()
    %cst_14 = arith.constant dense<0.000000e+00> : vector<8x8x8xf32>
    %73 = tpu.matmul %52, %62, %cst_14 {dimension_numbers = #tpu.dot_dimension_numbers<[2], [2], [1], [1], [0, 0, 0, 1, 1, 1], [0], [0]>} : vector<8x8x8xf32>, vector<8x8x8xf32>, vector<8x8x8xf32> -> vector<8x8x8xf32>
    "tpu.trace_stop"() : () -> ()
    %74 = arith.addf %73, %1 : vector<8x8x8xf32>
    %cst_15 = arith.constant dense<0xFF800000> : vector<8x8xf32>
    %75 = vector.multi_reduction <maximumf>, %74, %cst_15 [2] : vector<8x8x8xf32> to vector<8x8xf32>
    %76 = vector.shape_cast %75 : vector<8x8xf32> to vector<8x8x1xf32>
    %77 = vector.broadcast %76 : vector<8x8x1xf32> to vector<8x8x8xf32>
    %78 = arith.subf %74, %77 : vector<8x8x8xf32>
    %79 = math.exp %78 : vector<8x8x8xf32>
    %cst_16 = arith.constant dense<0.000000e+00> : vector<8x8xf32>
    %80 = vector.multi_reduction <add>, %79, %cst_16 [2] : vector<8x8x8xf32> to vector<8x8xf32>
    %81 = vector.shape_cast %80 : vector<8x8xf32> to vector<8x8x1xf32>
    %82 = tpu.reciprocal %81 : vector<8x8x1xf32> -> vector<8x8x1xf32>
    %83 = vector.broadcast %82 : vector<8x8x1xf32> to vector<8x8x8xf32>
    %84 = arith.mulf %79, %83 : vector<8x8x8xf32>
    "tpu.trace_start"() <{level = 10 : i32, message = "bqk,bkd->bqd"}> : () -> ()
    %cst_17 = arith.constant dense<0.000000e+00> : vector<8x8x8xf32>
    %85 = tpu.matmul %84, %72, %cst_17 {dimension_numbers = #tpu.dot_dimension_numbers<[2], [1], [1], [2], [0, 0, 0, 1, 1, 2], [0], [0]>} : vector<8x8x8xf32>, vector<8x8x8xf32>, vector<8x8x8xf32> -> vector<8x8x8xf32>
    "tpu.trace_stop"() : () -> ()
    %86 = vector.shape_cast %85 : vector<8x8x8xf32> to vector<2x4x8x8xf32>
    %87 = vector.extract_strided_slice %86 {offsets = [0, 0, 0, 0], sizes = [2, 1, 8, 8], strides = [1, 1, 1, 1]} : vector<2x4x8x8xf32> to vector<2x1x8x8xf32>
    %88 = vector.shape_cast %87 : vector<2x1x8x8xf32> to vector<2x8x8xf32>
    %89 = vector.shape_cast %88 : vector<2x8x8xf32> to vector<16x8xf32>
    %90 = vector.extract_strided_slice %86 {offsets = [0, 1, 0, 0], sizes = [2, 1, 8, 8], strides = [1, 1, 1, 1]} : vector<2x4x8x8xf32> to vector<2x1x8x8xf32>
    %91 = vector.shape_cast %90 : vector<2x1x8x8xf32> to vector<2x8x8xf32>
    %92 = vector.shape_cast %91 : vector<2x8x8xf32> to vector<16x8xf32>
    %93 = vector.extract_strided_slice %86 {offsets = [0, 2, 0, 0], sizes = [2, 1, 8, 8], strides = [1, 1, 1, 1]} : vector<2x4x8x8xf32> to vector<2x1x8x8xf32>
    %94 = vector.shape_cast %93 : vector<2x1x8x8xf32> to vector<2x8x8xf32>
    %95 = vector.shape_cast %94 : vector<2x8x8xf32> to vector<16x8xf32>
    %96 = vector.extract_strided_slice %86 {offsets = [0, 3, 0, 0], sizes = [2, 1, 8, 8], strides = [1, 1, 1, 1]} : vector<2x4x8x8xf32> to vector<2x1x8x8xf32>
    %97 = vector.shape_cast %96 : vector<2x1x8x8xf32> to vector<2x8x8xf32>
    %98 = vector.shape_cast %97 : vector<2x8x8xf32> to vector<16x8xf32>
    %99 = tpu.concatenate %89, %92, %95, %98 in 1 : vector<16x8xf32>, vector<16x8xf32>, vector<16x8xf32>, vector<16x8xf32> -> vector<16x32xf32>
    %100 = vector.extract_strided_slice %2 {offsets = [0, 96], sizes = [32, 32], strides = [1, 1]} : vector<32x128xf32> to vector<32x32xf32>
    %cst_18 = arith.constant dense<0.000000e+00> : vector<16x32xf32>
    %101 = tpu.matmul %99, %100, %cst_18 {dimension_numbers = #tpu.dot_dimension_numbers<[1], [0], [0], [1], [0, 0, 1, 1], [], []>} : vector<16x32xf32>, vector<32x32xf32>, vector<16x32xf32> -> vector<16x32xf32>
    %102 = vector.broadcast %9 : vector<1x32xf32> to vector<16x32xf32>
    %103 = arith.addf %101, %102 : vector<16x32xf32>
    %104 = arith.addf %33, %103 : vector<16x32xf32>
    %cst_19 = arith.constant dense<0.000000e+00> : vector<16xf32>
    %105 = vector.multi_reduction <add>, %104, %cst_19 [1] : vector<16x32xf32> to vector<16xf32>
    %106 = vector.shape_cast %105 : vector<16xf32> to vector<16x1xf32>
    %cst_20 = arith.constant 3.200000e+01 : f32
    %107 = vector.broadcast %cst_20 : f32 to vector<16x1xf32>
    %108 = arith.divf %106, %107 : vector<16x1xf32>
    %109 = vector.broadcast %108 : vector<16x1xf32> to vector<16x32xf32>
    %110 = arith.subf %104, %109 : vector<16x32xf32>
    %111 = arith.mulf %110, %110 : vector<16x32xf32>
    %cst_21 = arith.constant dense<0.000000e+00> : vector<16xf32>
    %112 = vector.multi_reduction <add>, %111, %cst_21 [1] : vector<16x32xf32> to vector<16xf32>
    %113 = vector.shape_cast %112 : vector<16xf32> to vector<16x1xf32>
    %cst_22 = arith.constant 3.200000e+01 : f32
    %114 = vector.broadcast %cst_22 : f32 to vector<16x1xf32>
    %115 = arith.divf %113, %114 : vector<16x1xf32>
    %116 = vector.broadcast %108 : vector<16x1xf32> to vector<16x32xf32>
    %117 = arith.subf %104, %116 : vector<16x32xf32>
    %cst_23 = arith.constant 9.99999974E-6 : f32
    %118 = vector.broadcast %cst_23 : f32 to vector<16x1xf32>
    %119 = arith.addf %115, %118 : vector<16x1xf32>
    %120 = math.rsqrt %119 : vector<16x1xf32>
    %121 = vector.broadcast %120 : vector<16x1xf32> to vector<16x32xf32>
    %122 = arith.mulf %117, %121 : vector<16x32xf32>
    %123 = vector.broadcast %6 : vector<1x32xf32> to vector<16x32xf32>
    %124 = arith.mulf %122, %123 : vector<16x32xf32>
    %125 = vector.broadcast %7 : vector<1x32xf32> to vector<16x32xf32>
    %126 = arith.addf %124, %125 : vector<16x32xf32>
    %c0_24 = arith.constant 0 : index
    %c0_25 = arith.constant 0 : index
    %127 = vector.load %arg4[%c0_24, %c0_25] : memref<32x64xf32, #tpu.memory_space<vmem>>, vector<32x64xf32>
    %cst_26 = arith.constant dense<0.000000e+00> : vector<16x64xf32>
    %128 = tpu.matmul %126, %127, %cst_26 {dimension_numbers = #tpu.dot_dimension_numbers<[1], [0], [0], [1], [0, 0, 1, 1], [], []>} : vector<16x32xf32>, vector<32x64xf32>, vector<16x64xf32> -> vector<16x64xf32>
    %129 = vector.broadcast %10 : vector<1x64xf32> to vector<16x64xf32>
    %130 = arith.addf %128, %129 : vector<16x64xf32>
    %cst_27 = arith.constant 5.000000e-01 : f32
    %131 = vector.broadcast %cst_27 : f32 to vector<16x64xf32>
    %132 = arith.mulf %131, %130 : vector<16x64xf32>
    %cst_28 = arith.constant 0.707106769 : f32
    %133 = vector.broadcast %cst_28 : f32 to vector<16x64xf32>
    %134 = arith.mulf %130, %133 : vector<16x64xf32>
    %135 = math.erf %134 : vector<16x64xf32>
    %cst_29 = arith.constant 1.000000e+00 : f32
    %136 = vector.broadcast %cst_29 : f32 to vector<16x64xf32>
    %137 = arith.addf %136, %135 : vector<16x64xf32>
    %138 = arith.mulf %132, %137 : vector<16x64xf32>
    %c0_30 = arith.constant 0 : index
    %c0_31 = arith.constant 0 : index
    %139 = vector.load %arg5[%c0_30, %c0_31] : memref<64x32xf32, #tpu.memory_space<vmem>>, vector<64x32xf32>
    %cst_32 = arith.constant dense<0.000000e+00> : vector<16x32xf32>
    %140 = tpu.matmul %138, %139, %cst_32 {dimension_numbers = #tpu.dot_dimension_numbers<[1], [0], [0], [1], [0, 0, 1, 1], [], []>} : vector<16x64xf32>, vector<64x32xf32>, vector<16x32xf32> -> vector<16x32xf32>
    %141 = vector.broadcast %11 : vector<1x32xf32> to vector<16x32xf32>
    %142 = arith.addf %140, %141 : vector<16x32xf32>
    %143 = arith.addf %126, %142 : vector<16x32xf32>
    %c0_33 = arith.constant 0 : index
    %c0_34 = arith.constant 0 : index
    %144 = vector.load %arg7[%c0_33, %c0_34] : memref<16x32xf32, #tpu.memory_space<vmem>>, vector<16x32xf32>
    tpu.vector_store %arg7[%c0_33, %c0_34], %143 {strides = array<i32>} : memref<16x32xf32, #tpu.memory_space<vmem>>, vector<16x32xf32>,
    return
  }
  func.func @transform_0(%arg0: i32) -> (i32, i32) {
    %c0_i32 = arith.constant 0 : i32
    %c0_i32_0 = arith.constant 0 : i32
    %c0_i32_1 = arith.constant 0 : i32
    return %c0_i32, %c0_i32_0 : i32, i32
  }
  func.func @transform_1(%arg0: i32) -> (i32, i32, i32) {
    %c0_i32 = arith.constant 0 : i32
    %c0_i32_0 = arith.constant 0 : i32
    %c0_i32_1 = arith.constant 0 : i32
    %c0_i32_2 = arith.constant 0 : i32
    return %c0_i32, %c0_i32_0, %c0_i32_1 : i32, i32, i32
  }
  func.func @transform_2(%arg0: i32) -> (i32, i32) {
    %c0_i32 = arith.constant 0 : i32
    %c0_i32_0 = arith.constant 0 : i32
    %c0_i32_1 = arith.constant 0 : i32
    return %c0_i32, %c0_i32_0 : i32, i32
  }
  func.func @transform_3(%arg0: i32) -> (i32, i32) {
    %c0_i32 = arith.constant 0 : i32
    %c0_i32_0 = arith.constant 0 : i32
    %c0_i32_1 = arith.constant 0 : i32
    return %c0_i32, %c0_i32_0 : i32, i32
  }
  func.func @transform_4(%arg0: i32) -> (i32, i32) {
    %c0_i32 = arith.constant 0 : i32
    %c0_i32_0 = arith.constant 0 : i32
    %c0_i32_1 = arith.constant 0 : i32
    return %c0_i32, %c0_i32_0 : i32, i32
  }
  func.func @transform_5(%arg0: i32) -> (i32, i32) {
    %c0_i32 = arith.constant 0 : i32
    %c0_i32_0 = arith.constant 0 : i32
    %c0_i32_1 = arith.constant 0 : i32
    return %c0_i32, %c0_i32_0 : i32, i32
  }
  func.func @transform_6(%arg0: i32) -> (i32, i32) {
    %c0_i32 = arith.constant 0 : i32
    %c0_i32_0 = arith.constant 0 : i32
    %c0_i32_1 = arith.constant 0 : i32
    return %c0_i32, %c0_i32_0 : i32, i32
  }
}

</mosaic_0001>

<llo_original>
// kernel: tpu_custom_call.1
$region0: #{tpu_custom_call.1}
  #allocation0 [shape = 'u32[]', space=smem, size = 0x4, offset = 0x4, fixed_abs, tag = 'smem constant byte address 0x4 - core index']
  #allocation1 [shape = 'u32[144,128]{1,0:T(1,128)}', space=vmem, size = 0x12000, scoped, tag = 'internal scratch']
  %s0 = inlined_call_operand.hbm [shape: f32[16,32], index: 0, kind: input, shape index: {}]
  %s1 = inlined_call_operand.vmem [shape: f32[8,8,8], index: 1, kind: input, shape index: {}]
  %s2 = inlined_call_operand.vmem [shape: f32[32,128], index: 2, kind: input, shape index: {}]
  %s3 = inlined_call_operand.hbm [shape: f32[32,64], index: 3, kind: input, shape index: {}]
  %s4 = inlined_call_operand.vmem [shape: f32[64,32], index: 4, kind: input, shape index: {}]
  %s5 = inlined_call_operand.vmem [shape: f32[3,128], index: 5, kind: input, shape index: {}]
  %s6 = inlined_call_operand.hbm [shape: f32[16,32], index: 6, kind: output, shape index: {}]
  %s7 = sld [smem:[#allocation0]]
  $region42: #{tpu_custom_call.1} parent=0
    _
  %s9 = ssub.s32 1, %s7
  %s10 = scalar_select 0, %s9, %s7
  $region1: #{tpu_custom_call.1} parent=0
    #allocation2 [shape = 'u8[8192]{0}', space=vmem, size = 0x2000, scoped, tag = 'input window, operand 0, single buffered']
    #allocation3 [shape = 's32[1]{0}', space=sflag, size = 0x4, scoped, tag = 'scoped memory for tpu_custom_call.1']
    #allocation4 [shape = 's32[1]{0}', space=sflag, size = 0x4, scoped, tag = 'scoped memory for tpu_custom_call.1']
    #allocation5 [shape = 'u8[16384]{0}', space=vmem, size = 0x4000, scoped, tag = 'input window, operand 3, single buffered']
    #allocation6 [shape = 's32[1]{0}', space=sflag, size = 0x4, scoped, tag = 'scoped memory for tpu_custom_call.1']
    #allocation7 [shape = 'u8[8192]{0}', space=vmem, size = 0x2000, scoped, tag = 'output window, operand 0, single buffered']
    %11 = vsyncpa [#allocation3], 0
    %12 = vsyncpa [#allocation6], 0
    %13 = vsyncpa [#allocation4], 0
    // Predicated region
    $region2: #{tpu_custom_call.1} parent=1 // pred_check
      _
    $region3: #{tpu_custom_call.1} parent=1 // pred_check_branch
      %15 = sbr.rel (0) target = $region5
    $region4: #{tpu_custom_call.1} parent=1 // pred_region
      %s17 = ssub.s32 256, 256
      %18 = vsyncadd [#allocation3], %s17
      %s19 = sshll.u32 [#allocation2], 4
      %s20 = int_to_ptr.vmem [resolvable:$true] %s19
      %25 = dma.hbm_to_vmem [thread:$0]  %s0, 256, %s20, [#allocation3], 128, 128, 8
    $region5: #{tpu_custom_call.1} parent=1 // pred_fallthru
      _
    // Predicated region
    $region6: #{tpu_custom_call.1} parent=1 // pred_check
      _
    $region7: #{tpu_custom_call.1} parent=1 // pred_check_branch
      %27 = sbr.rel (0) target = $region9
    $region8: #{tpu_custom_call.1} parent=1 // pred_region
      _
    $region9: #{tpu_custom_call.1} parent=1 // pred_fallthru
      _
    // Predicated region
    $region10: #{tpu_custom_call.1} parent=1 // pred_check
      _
    $region11: #{tpu_custom_call.1} parent=1 // pred_check_branch
      %29 = sbr.rel (0) target = $region13
    $region12: #{tpu_custom_call.1} parent=1 // pred_region
      _
    $region13: #{tpu_custom_call.1} parent=1 // pred_fallthru
      _
    // Predicated region
    $region14: #{tpu_custom_call.1} parent=1 // pred_check
      _
    $region15: #{tpu_custom_call.1} parent=1 // pred_check_branch
      %31 = sbr.rel (0) target = $region17
    $region16: #{tpu_custom_call.1} parent=1 // pred_region
      %s33 = ssub.s32 512, 512
      %34 = vsyncadd [#allocation6], %s33
      %s35 = sshll.u32 [#allocation5], 4
      %s36 = int_to_ptr.vmem [resolvable:$true] %s35
      %41 = dma.hbm_to_vmem [thread:$0]  %s3, 512, %s36, [#allocation6], 128, 128, 8
    $region17: #{tpu_custom_call.1} parent=1 // pred_fallthru
      _
    // Predicated region
    $region18: #{tpu_custom_call.1} parent=1 // pred_check
      _
    $region19: #{tpu_custom_call.1} parent=1 // pred_check_branch
      %43 = sbr.rel (0) target = $region21
    $region20: #{tpu_custom_call.1} parent=1 // pred_region
      _
    $region21: #{tpu_custom_call.1} parent=1 // pred_fallthru
      _
    // Predicated region
    $region22: #{tpu_custom_call.1} parent=1 // pred_check
      _
    $region23: #{tpu_custom_call.1} parent=1 // pred_check_branch
      %45 = sbr.rel (0) target = $region25
    $region24: #{tpu_custom_call.1} parent=1 // pred_region
      _
    $region25: #{tpu_custom_call.1} parent=1 // pred_fallthru
      _
    // Predicated region
    $region26: #{tpu_custom_call.1} parent=1 // pred_check
      _
    $region27: #{tpu_custom_call.1} parent=1 // pred_check_branch
      %47 = sbr.rel (0) target = $region29
    $region28: #{tpu_custom_call.1} parent=1 // pred_region
      %48 = dma.done [#allocation3], 256
    $region29: #{tpu_custom_call.1} parent=1 // pred_fallthru
      _
    // Predicated region
    $region30: #{tpu_custom_call.1} parent=1 // pred_check
      _
    $region31: #{tpu_custom_call.1} parent=1 // pred_check_branch
      %50 = sbr.rel (0) target = $region33
    $region32: #{tpu_custom_call.1} parent=1 // pred_region
      %51 = dma.done [#allocation6], 512
    $region33: #{tpu_custom_call.1} parent=1 // pred_fallthru
      _
    %v52 = vld [vmem:[#allocation2] sm:$0xff]
    %v53 = vld [vmem:[#allocation2 + $0x8] sm:$0xff]
    %v54 = vld [vmem:[%s1] sm:$0xff]
    %v55 = vld [vmem:[%s1 + $0x8] sm:$0xff]
    %v56 = vld [vmem:[%s1 + $0x10] sm:$0xff]
    %v57 = vld [vmem:[%s1 + $0x18] sm:$0xff]
    %v58 = vld [vmem:[%s1 + $0x20] sm:$0xff]
    %v59 = vld [vmem:[%s1 + $0x28] sm:$0xff]
    %v60 = vld [vmem:[%s1 + $0x30] sm:$0xff]
    %v61 = vld [vmem:[%s1 + $0x38] sm:$0xff]
    %v62 = vld [vmem:[%s2] sm:$0xff]
    %v63 = vld [vmem:[%s2 + $0x8] sm:$0xff]
    %v64 = vld [vmem:[%s2 + $0x10] sm:$0xff]
    %v65 = vld [vmem:[%s2 + $0x18] sm:$0xff]
    %v66 = vld [vmem:[%s5] sm:$0x7]
    %vm67 = vcmask 261120
    %v68 = vsel %vm67, %v52, 0.0
    %69 = vadd.xlane.f32.xlu0 %v68
    %v70 = vpop.xlane.xlu0 %69
    %v71 = vsel %vm67, %v53, 0.0
    %72 = vadd.xlane.f32.xlu0 %v71
    %v73 = vpop.xlane.xlu0 %72
    %v74 = vrcp.pop 32.0
    %v75 = vmul.f32 %v70, %v74
    %v76 = vmul.f32 %v73, %v74
    %v77 = vsub.f32 %v52, %v75
    %v78 = vsub.f32 %v53, %v76
    %v79 = vmul.f32 %v77, %v77
    %v80 = vmul.f32 %v78, %v78
    %v81 = vsel %vm67, %v79, 0.0
    %82 = vadd.xlane.f32.xlu0 %v81
    %v83 = vpop.xlane.xlu0 %82
    %v84 = vsel %vm67, %v80, 0.0
    %85 = vadd.xlane.f32.xlu0 %v84
    %v86 = vpop.xlane.xlu0 %85
    %v87 = vmul.f32 %v83, %v74
    %v88 = vmul.f32 %v86, %v74
    %v89 = vadd.f32 %v87, 1e-05
    %v90 = vadd.f32 %v88, 1e-05
    %v91 = vrsqrt.pop %v89
    %v92 = vrsqrt.pop %v90
    %v93 = vmul.f32 %v77, %v91
    %v94 = vmul.f32 %v78, %v92
    %v95 = vlaneseq
    %v96 = vshrl.u32 %v95, 7
    %v97 = vsub.s32 0, %v96
    %v98 = vrot.slane %v66, %v97
    %v99 = vmul.f32 %v93, %v98
    %v100 = vmul.f32 %v94, %v98
    %102 = vrot.lane.b32.xlu0 %v98, 96
    %v103 = vpop.permute.xlu0 %102
    %v105 = vadd.f32 %v99, %v103
    %v106 = vadd.f32 %v100, %v103
    %v108 = vsel %vm67, %v105, 0
    %v111 = vsel %vm67, %v106, 0
    %113 = vmatprep.subr.mxu0 0.0
    %114 = vmatpush1.msra.mxu0 %v62
    %115 = vmatprep.subr.mxu0 0.0
    %116 = vmatpush1.msra.mxu0 %v63
    %117 = vmatprep.subr.mxu0 0.0
    %118 = vmatpush1.msra.mxu0 %v64
    %119 = vmatprep.subr.mxu0 0.0
    %120 = vmatpush1.msra.mxu0 %v65
    %121 = vmatprep.subr.mxu0 0.0
    %122 = vmatpush1.msra.mxu0 0.0
    %123 = vmatprep.subr.mxu0 0.0
    %124 = vmatpush1.msra.mxu0 0.0
    %125 = vmatprep.subr.mxu0 0.0
    %126 = vmatpush1.msra.mxu0 0.0
    %127 = vmatprep.subr.mxu0 0.0
    %128 = vmatpush1.msra.mxu0 0.0
    %129 = vmatprep.subr.mxu0 0.0
    %130 = vmatpush1.msra.mxu0 0.0
    %131 = vmatprep.subr.mxu0 0.0
    %132 = vmatpush1.msra.mxu0 0.0
    %133 = vmatprep.subr.mxu0 0.0
    %134 = vmatpush1.msra.mxu0 0.0
    %135 = vmatprep.subr.mxu0 0.0
    %136 = vmatpush1.msra.mxu0 0.0
    %137 = vmatprep.subr.mxu0 0.0
    %138 = vmatpush1.msra.mxu0 0.0
    %139 = vmatprep.subr.mxu0 0.0
    %140 = vmatpush1.msra.mxu0 0.0
    %141 = vmatprep.subr.mxu0 0.0
    %142 = vmatpush1.msra.mxu0 0.0
    %143 = vmatprep.subr.mxu0 0.0
    %144 = vmatpush1.msra.mxu0 0.0
    %145 = vmatprep.subr.mxu0 0.0
    %146 = vmatpush1.msra.mxu0 0.0
    %147 = vmatprep.subr.mxu0 0.0
    %148 = vmatpush1.msra.mxu0 0.0
    %149 = vmatprep.subr.mxu0 0.0
    %150 = vmatpush1.msra.mxu0 0.0
    %151 = vmatprep.subr.mxu0 0.0
    %152 = vmatpush1.msra.mxu0 0.0
    %153 = vmatprep.subr.mxu0 0.0
    %154 = vmatpush1.msra.mxu0 0.0
    %155 = vmatprep.subr.mxu0 0.0
    %156 = vmatpush1.msra.mxu0 0.0
    %157 = vmatprep.subr.mxu0 0.0
    %158 = vmatpush1.msra.mxu0 0.0
    %159 = vmatprep.subr.mxu0 0.0
    %160 = vmatpush1.msra.mxu0 0.0
    %161 = vmatprep.subr.mxu0 0.0
    %162 = vmatpush1.msra.mxu0 0.0
    %163 = vmatprep.subr.mxu0 0.0
    %164 = vmatpush1.msra.mxu0 0.0
    %165 = vmatprep.subr.mxu0 0.0
    %166 = vmatpush1.msra.mxu0 0.0
    %167 = vmatprep.subr.mxu0 0.0
    %168 = vmatpush1.msra.mxu0 0.0
    %169 = vmatprep.subr.mxu0 0.0
    %170 = vmatpush1.msra.mxu0 0.0
    %171 = vmatprep.subr.mxu0 0.0
    %172 = vmatpush1.msra.mxu0 0.0
    %173 = vmatprep.subr.mxu0 0.0
    %174 = vmatpush1.msra.mxu0 0.0
    %175 = vmatprep.subr.mxu0 0.0
    %176 = vmatpush1.msra.mxu0 0.0
    %177 = vmatprep.mubr.f32.mxu0 0.0
    %178 = vmatmul.mubr.f32.gmra.mrb[0].mxu0 %v108
    %v179 = vpop.f32.mrb[0].mxu0
    %v180 = vadd.f32 0.0, %v179
    %v181 = vpop.f32.mrb[0].mxu0
    %182 = vmatprep.mubr.f32.mxu0 0.0
    %183 = vmatmul.mubr.f32.gmra.mrb[0].mxu0 %v111
    %v184 = vpop.f32.mrb[0].mxu0
    %v185 = vadd.f32 0.0, %v184
    %v186 = vpop.f32.mrb[0].mxu0
    %187 = vdwg.mxu0
    %v188 = vlaneseq
    %v189 = vshrl.u32 %v188, 7
    %v190 = vsub.s32 1, %v189
    %v191 = vrot.slane %v66, %v190
    %v192 = vadd.f32 %v180, %v191
    %v193 = vadd.f32 %v185, %v191
    %v194 = vmul.f32 %v192, 0.35355338
    %v195 = vmul.f32 %v193, 0.35355338
    %198 = vrot.lane.b32.xlu0 %v194, 120
    %v199 = vpop.permute.xlu0 %198
    %200 = vrot.lane.b32.xlu0 %v195, 120
    %v201 = vpop.permute.xlu0 %200
    %202 = vrot.lane.b32.xlu0 %v194, 112
    %v203 = vpop.permute.xlu0 %202
    %204 = vrot.lane.b32.xlu0 %v195, 112
    %v205 = vpop.permute.xlu0 %204
    %206 = vrot.lane.b32.xlu0 %v194, 104
    %v207 = vpop.permute.xlu0 %206
    %208 = vrot.lane.b32.xlu0 %v195, 104
    %v209 = vpop.permute.xlu0 %208
    %212 = vrot.lane.b32.xlu0 %v192, 120
    %v213 = vpop.permute.xlu0 %212
    %214 = vrot.lane.b32.xlu0 %v193, 120
    %v215 = vpop.permute.xlu0 %214
    %216 = vrot.lane.b32.xlu0 %v192, 112
    %v217 = vpop.permute.xlu0 %216
    %218 = vrot.lane.b32.xlu0 %v193, 112
    %v219 = vpop.permute.xlu0 %218
    %220 = vrot.lane.b32.xlu0 %v192, 104
    %v221 = vpop.permute.xlu0 %220
    %222 = vrot.lane.b32.xlu0 %v193, 104
    %v223 = vpop.permute.xlu0 %222
    %224 = vrot.lane.b32.xlu0 %v192, 96
    %v225 = vpop.permute.xlu0 %224
    %vm226 = vcmask 64512
    %v227 = vsel %vm226, %v194, 0
    %v229 = vsel %vm226, %v225, 0
    %231 = vmatprep.subr.mxu0 0.0
    %232 = vmatpush1.xpose.msra.mxu0 %v229
    %233 = vmatprep.subr.mxu0 0.0
    %234 = vmatpush1.xpose.msra.mxu0 0.0
    %235 = vmatprep.subr.mxu0 0.0
    %236 = vmatpush1.xpose.msra.mxu0 0.0
    %237 = vmatprep.subr.mxu0 0.0
    %238 = vmatpush1.xpose.msra.mxu0 0.0
    %239 = vmatprep.subr.mxu0 0.0
    %240 = vmatpush1.xpose.msra.mxu0 0.0
    %241 = vmatprep.subr.mxu0 0.0
    %242 = vmatpush1.xpose.msra.mxu0 0.0
    %243 = vmatprep.subr.mxu0 0.0
    %244 = vmatpush1.xpose.msra.mxu0 0.0
    %245 = vmatprep.subr.mxu0 0.0
    %246 = vmatpush1.xpose.msra.mxu0 0.0
    %247 = vmatprep.subr.mxu0 0.0
    %248 = vmatpush1.xpose.msra.mxu0 0.0
    %249 = vmatprep.subr.mxu0 0.0
    %250 = vmatpush1.xpose.msra.mxu0 0.0
    %251 = vmatprep.subr.mxu0 0.0
    %252 = vmatpush1.xpose.msra.mxu0 0.0
    %253 = vmatprep.subr.mxu0 0.0
    %254 = vmatpush1.xpose.msra.mxu0 0.0
    %255 = vmatprep.subr.mxu0 0.0
    %256 = vmatpush1.xpose.msra.mxu0 0.0
    %257 = vmatprep.subr.mxu0 0.0
    %258 = vmatpush1.xpose.msra.mxu0 0.0
    %259 = vmatprep.subr.mxu0 0.0
    %260 = vmatpush1.xpose.msra.mxu0 0.0
    %261 = vmatprep.subr.mxu0 0.0
    %262 = vmatpush1.xpose.msra.mxu0 0.0
    %263 = vmatprep.subr.mxu0 0.0
    %264 = vmatpush1.xpose.msra.mxu0 0.0
    %265 = vmatprep.subr.mxu0 0.0
    %266 = vmatpush1.xpose.msra.mxu0 0.0
    %267 = vmatprep.subr.mxu0 0.0
    %268 = vmatpush1.xpose.msra.mxu0 0.0
    %269 = vmatprep.subr.mxu0 0.0
    %270 = vmatpush1.xpose.msra.mxu0 0.0
    %271 = vmatprep.subr.mxu0 0.0
    %272 = vmatpush1.xpose.msra.mxu0 0.0
    %273 = vmatprep.subr.mxu0 0.0
    %274 = vmatpush1.xpose.msra.mxu0 0.0
    %275 = vmatprep.subr.mxu0 0.0
    %276 = vmatpush1.xpose.msra.mxu0 0.0
    %277 = vmatprep.subr.mxu0 0.0
    %278 = vmatpush1.xpose.msra.mxu0 0.0
    %279 = vmatprep.subr.mxu0 0.0
    %280 = vmatpush1.xpose.msra.mxu0 0.0
    %281 = vmatprep.subr.mxu0 0.0
    %282 = vmatpush1.xpose.msra.mxu0 0.0
    %283 = vmatprep.subr.mxu0 0.0
    %284 = vmatpush1.xpose.msra.mxu0 0.0
    %285 = vmatprep.subr.mxu0 0.0
    %286 = vmatpush1.xpose.msra.mxu0 0.0
    %287 = vmatprep.subr.mxu0 0.0
    %288 = vmatpush1.xpose.msra.mxu0 0.0
    %289 = vmatprep.subr.mxu0 0.0
    %290 = vmatpush1.xpose.msra.mxu0 0.0
    %291 = vmatprep.subr.mxu0 0.0
    %292 = vmatpush1.xpose.msra.mxu0 0.0
    %293 = vmatprep.subr.mxu0 0.0
    %294 = vmatpush1.xpose.msra.mxu0 0.0
    %295 = vmatprep.mubr.f32.mxu0 0.0
    %296 = vmatmul.mubr.f32.gmra.mrb[0].mxu0 %v227
    %v297 = vpop.f32.mrb[0].mxu0
    %v298 = vadd.f32 %v54, %v297
    %v299 = vpop.f32.mrb[0].mxu0
    %300 = vdwg.mxu0
    %301 = vrot.lane.b32.xlu0 %v213, 96
    %v302 = vpop.permute.xlu0 %301
    %v303 = vsel %vm226, %v199, 0
    %v305 = vsel %vm226, %v302, 0
    %307 = vmatprep.subr.mxu0 0.0
    %308 = vmatpush1.xpose.msra.mxu0 %v305
    %309 = vmatprep.subr.mxu0 0.0
    %310 = vmatpush1.xpose.msra.mxu0 0.0
    %311 = vmatprep.subr.mxu0 0.0
    %312 = vmatpush1.xpose.msra.mxu0 0.0
    %313 = vmatprep.subr.mxu0 0.0
    %314 = vmatpush1.xpose.msra.mxu0 0.0
    %315 = vmatprep.subr.mxu0 0.0
    %316 = vmatpush1.xpose.msra.mxu0 0.0
    %317 = vmatprep.subr.mxu0 0.0
    %318 = vmatpush1.xpose.msra.mxu0 0.0
    %319 = vmatprep.subr.mxu0 0.0
    %320 = vmatpush1.xpose.msra.mxu0 0.0
    %321 = vmatprep.subr.mxu0 0.0
    %322 = vmatpush1.xpose.msra.mxu0 0.0
    %323 = vmatprep.subr.mxu0 0.0
    %324 = vmatpush1.xpose.msra.mxu0 0.0
    %325 = vmatprep.subr.mxu0 0.0
    %326 = vmatpush1.xpose.msra.mxu0 0.0
    %327 = vmatprep.subr.mxu0 0.0
    %328 = vmatpush1.xpose.msra.mxu0 0.0
    %329 = vmatprep.subr.mxu0 0.0
    %330 = vmatpush1.xpose.msra.mxu0 0.0
    %331 = vmatprep.subr.mxu0 0.0
    %332 = vmatpush1.xpose.msra.mxu0 0.0
    %333 = vmatprep.subr.mxu0 0.0
    %334 = vmatpush1.xpose.msra.mxu0 0.0
    %335 = vmatprep.subr.mxu0 0.0
    %336 = vmatpush1.xpose.msra.mxu0 0.0
    %337 = vmatprep.subr.mxu0 0.0
    %338 = vmatpush1.xpose.msra.mxu0 0.0
    %339 = vmatprep.subr.mxu0 0.0
    %340 = vmatpush1.xpose.msra.mxu0 0.0
    %341 = vmatprep.subr.mxu0 0.0
    %342 = vmatpush1.xpose.msra.mxu0 0.0
    %343 = vmatprep.subr.mxu0 0.0
    %344 = vmatpush1.xpose.msra.mxu0 0.0
    %345 = vmatprep.subr.mxu0 0.0
    %346 = vmatpush1.xpose.msra.mxu0 0.0
    %347 = vmatprep.subr.mxu0 0.0
    %348 = vmatpush1.xpose.msra.mxu0 0.0
    %349 = vmatprep.subr.mxu0 0.0
    %350 = vmatpush1.xpose.msra.mxu0 0.0
    %351 = vmatprep.subr.mxu0 0.0
    %352 = vmatpush1.xpose.msra.mxu0 0.0
    %353 = vmatprep.subr.mxu0 0.0
    %354 = vmatpush1.xpose.msra.mxu0 0.0
    %355 = vmatprep.subr.mxu0 0.0
    %356 = vmatpush1.xpose.msra.mxu0 0.0
    %357 = vmatprep.subr.mxu0 0.0
    %358 = vmatpush1.xpose.msra.mxu0 0.0
    %359 = vmatprep.subr.mxu0 0.0
    %360 = vmatpush1.xpose.msra.mxu0 0.0
    %361 = vmatprep.subr.mxu0 0.0
    %362 = vmatpush1.xpose.msra.mxu0 0.0
    %363 = vmatprep.subr.mxu0 0.0
    %364 = vmatpush1.xpose.msra.mxu0 0.0
    %365 = vmatprep.subr.mxu0 0.0
    %366 = vmatpush1.xpose.msra.mxu0 0.0
    %367 = vmatprep.subr.mxu0 0.0
    %368 = vmatpush1.xpose.msra.mxu0 0.0
    %369 = vmatprep.subr.mxu0 0.0
    %370 = vmatpush1.xpose.msra.mxu0 0.0
    %371 = vmatprep.mubr.f32.mxu0 0.0
    %372 = vmatmul.mubr.f32.gmra.mrb[0].mxu0 %v303
    %v373 = vpop.f32.mrb[0].mxu0
    %v374 = vadd.f32 %v55, %v373
    %v375 = vpop.f32.mrb[0].mxu0
    %376 = vdwg.mxu0
    %377 = vrot.lane.b32.xlu0 %v217, 96
    %v378 = vpop.permute.xlu0 %377
    %v379 = vsel %vm226, %v203, 0
    %v381 = vsel %vm226, %v378, 0
    %383 = vmatprep.subr.mxu0 0.0
    %384 = vmatpush1.xpose.msra.mxu0 %v381
    %385 = vmatprep.subr.mxu0 0.0
    %386 = vmatpush1.xpose.msra.mxu0 0.0
    %387 = vmatprep.subr.mxu0 0.0
    %388 = vmatpush1.xpose.msra.mxu0 0.0
    %389 = vmatprep.subr.mxu0 0.0
    %390 = vmatpush1.xpose.msra.mxu0 0.0
    %391 = vmatprep.subr.mxu0 0.0
    %392 = vmatpush1.xpose.msra.mxu0 0.0
    %393 = vmatprep.subr.mxu0 0.0
    %394 = vmatpush1.xpose.msra.mxu0 0.0
    %395 = vmatprep.subr.mxu0 0.0
    %396 = vmatpush1.xpose.msra.mxu0 0.0
    %397 = vmatprep.subr.mxu0 0.0
    %398 = vmatpush1.xpose.msra.mxu0 0.0
    %399 = vmatprep.subr.mxu0 0.0
    %400 = vmatpush1.xpose.msra.mxu0 0.0
    %401 = vmatprep.subr.mxu0 0.0
    %402 = vmatpush1.xpose.msra.mxu0 0.0
    %403 = vmatprep.subr.mxu0 0.0
    %404 = vmatpush1.xpose.msra.mxu0 0.0
    %405 = vmatprep.subr.mxu0 0.0
    %406 = vmatpush1.xpose.msra.mxu0 0.0
    %407 = vmatprep.subr.mxu0 0.0
    %408 = vmatpush1.xpose.msra.mxu0 0.0
    %409 = vmatprep.subr.mxu0 0.0
    %410 = vmatpush1.xpose.msra.mxu0 0.0
    %411 = vmatprep.subr.mxu0 0.0
    %412 = vmatpush1.xpose.msra.mxu0 0.0
    %413 = vmatprep.subr.mxu0 0.0
    %414 = vmatpush1.xpose.msra.mxu0 0.0
    %415 = vmatprep.subr.mxu0 0.0
    %416 = vmatpush1.xpose.msra.mxu0 0.0
    %417 = vmatprep.subr.mxu0 0.0
    %418 = vmatpush1.xpose.msra.mxu0 0.0
    %419 = vmatprep.subr.mxu0 0.0
    %420 = vmatpush1.xpose.msra.mxu0 0.0
    %421 = vmatprep.subr.mxu0 0.0
    %422 = vmatpush1.xpose.msra.mxu0 0.0
    %423 = vmatprep.subr.mxu0 0.0
    %424 = vmatpush1.xpose.msra.mxu0 0.0
    %425 = vmatprep.subr.mxu0 0.0
    %426 = vmatpush1.xpose.msra.mxu0 0.0
    %427 = vmatprep.subr.mxu0 0.0
    %428 = vmatpush1.xpose.msra.mxu0 0.0
    %429 = vmatprep.subr.mxu0 0.0
    %430 = vmatpush1.xpose.msra.mxu0 0.0
    %431 = vmatprep.subr.mxu0 0.0
    %432 = vmatpush1.xpose.msra.mxu0 0.0
    %433 = vmatprep.subr.mxu0 0.0
    %434 = vmatpush1.xpose.msra.mxu0 0.0
    %435 = vmatprep.subr.mxu0 0.0
    %436 = vmatpush1.xpose.msra.mxu0 0.0
    %437 = vmatprep.subr.mxu0 0.0
    %438 = vmatpush1.xpose.msra.mxu0 0.0
    %439 = vmatprep.subr.mxu0 0.0
    %440 = vmatpush1.xpose.msra.mxu0 0.0
    %441 = vmatprep.subr.mxu0 0.0
    %442 = vmatpush1.xpose.msra.mxu0 0.0
    %443 = vmatprep.subr.mxu0 0.0
    %444 = vmatpush1.xpose.msra.mxu0 0.0
    %445 = vmatprep.subr.mxu0 0.0
    %446 = vmatpush1.xpose.msra.mxu0 0.0
    %447 = vmatprep.mubr.f32.mxu0 0.0
    %448 = vmatmul.mubr.f32.gmra.mrb[0].mxu0 %v379
    %v449 = vpop.f32.mrb[0].mxu0
    %v450 = vadd.f32 %v56, %v449
    %v451 = vpop.f32.mrb[0].mxu0
    %452 = vdwg.mxu0
    %453 = vrot.lane.b32.xlu0 %v221, 96
    %v454 = vpop.permute.xlu0 %453
    %v455 = vsel %vm226, %v207, 0
    %v457 = vsel %vm226, %v454, 0
    %459 = vmatprep.subr.mxu0 0.0
    %460 = vmatpush1.xpose.msra.mxu0 %v457
    %461 = vmatprep.subr.mxu0 0.0
    %462 = vmatpush1.xpose.msra.mxu0 0.0
    %463 = vmatprep.subr.mxu0 0.0
    %464 = vmatpush1.xpose.msra.mxu0 0.0
    %465 = vmatprep.subr.mxu0 0.0
    %466 = vmatpush1.xpose.msra.mxu0 0.0
    %467 = vmatprep.subr.mxu0 0.0
    %468 = vmatpush1.xpose.msra.mxu0 0.0
    %469 = vmatprep.subr.mxu0 0.0
    %470 = vmatpush1.xpose.msra.mxu0 0.0
    %471 = vmatprep.subr.mxu0 0.0
    %472 = vmatpush1.xpose.msra.mxu0 0.0
    %473 = vmatprep.subr.mxu0 0.0
    %474 = vmatpush1.xpose.msra.mxu0 0.0
    %475 = vmatprep.subr.mxu0 0.0
    %476 = vmatpush1.xpose.msra.mxu0 0.0
    %477 = vmatprep.subr.mxu0 0.0
    %478 = vmatpush1.xpose.msra.mxu0 0.0
    %479 = vmatprep.subr.mxu0 0.0
    %480 = vmatpush1.xpose.msra.mxu0 0.0
    %481 = vmatprep.subr.mxu0 0.0
    %482 = vmatpush1.xpose.msra.mxu0 0.0
    %483 = vmatprep.subr.mxu0 0.0
    %484 = vmatpush1.xpose.msra.mxu0 0.0
    %485 = vmatprep.subr.mxu0 0.0
    %486 = vmatpush1.xpose.msra.mxu0 0.0
    %487 = vmatprep.subr.mxu0 0.0
    %488 = vmatpush1.xpose.msra.mxu0 0.0
    %489 = vmatprep.subr.mxu0 0.0
    %490 = vmatpush1.xpose.msra.mxu0 0.0
    %491 = vmatprep.subr.mxu0 0.0
    %492 = vmatpush1.xpose.msra.mxu0 0.0
    %493 = vmatprep.subr.mxu0 0.0
    %494 = vmatpush1.xpose.msra.mxu0 0.0
    %495 = vmatprep.subr.mxu0 0.0
    %496 = vmatpush1.xpose.msra.mxu0 0.0
    %497 = vmatprep.subr.mxu0 0.0
    %498 = vmatpush1.xpose.msra.mxu0 0.0
    %499 = vmatprep.subr.mxu0 0.0
    %500 = vmatpush1.xpose.msra.mxu0 0.0
    %501 = vmatprep.subr.mxu0 0.0
    %502 = vmatpush1.xpose.msra.mxu0 0.0
    %503 = vmatprep.subr.mxu0 0.0
    %504 = vmatpush1.xpose.msra.mxu0 0.0
    %505 = vmatprep.subr.mxu0 0.0
    %506 = vmatpush1.xpose.msra.mxu0 0.0
    %507 = vmatprep.subr.mxu0 0.0
    %508 = vmatpush1.xpose.msra.mxu0 0.0
    %509 = vmatprep.subr.mxu0 0.0
    %510 = vmatpush1.xpose.msra.mxu0 0.0
    %511 = vmatprep.subr.mxu0 0.0
    %512 = vmatpush1.xpose.msra.mxu0 0.0
    %513 = vmatprep.subr.mxu0 0.0
    %514 = vmatpush1.xpose.msra.mxu0 0.0
    %515 = vmatprep.subr.mxu0 0.0
    %516 = vmatpush1.xpose.msra.mxu0 0.0
    %517 = vmatprep.subr.mxu0 0.0
    %518 = vmatpush1.xpose.msra.mxu0 0.0
    %519 = vmatprep.subr.mxu0 0.0
    %520 = vmatpush1.xpose.msra.mxu0 0.0
    %521 = vmatprep.subr.mxu0 0.0
    %522 = vmatpush1.xpose.msra.mxu0 0.0
    %523 = vmatprep.mubr.f32.mxu0 0.0
    %524 = vmatmul.mubr.f32.gmra.mrb[0].mxu0 %v455
    %v525 = vpop.f32.mrb[0].mxu0
    %v526 = vadd.f32 %v57, %v525
    %v527 = vpop.f32.mrb[0].mxu0
    %528 = vdwg.mxu0
    %529 = vrot.lane.b32.xlu0 %v193, 96
    %v530 = vpop.permute.xlu0 %529
    %v531 = vsel %vm226, %v195, 0
    %v533 = vsel %vm226, %v530, 0
    %535 = vmatprep.subr.mxu0 0.0
    %536 = vmatpush1.xpose.msra.mxu0 %v533
    %537 = vmatprep.subr.mxu0 0.0
    %538 = vmatpush1.xpose.msra.mxu0 0.0
    %539 = vmatprep.subr.mxu0 0.0
    %540 = vmatpush1.xpose.msra.mxu0 0.0
    %541 = vmatprep.subr.mxu0 0.0
    %542 = vmatpush1.xpose.msra.mxu0 0.0
    %543 = vmatprep.subr.mxu0 0.0
    %544 = vmatpush1.xpose.msra.mxu0 0.0
    %545 = vmatprep.subr.mxu0 0.0
    %546 = vmatpush1.xpose.msra.mxu0 0.0
    %547 = vmatprep.subr.mxu0 0.0
    %548 = vmatpush1.xpose.msra.mxu0 0.0
    %549 = vmatprep.subr.mxu0 0.0
    %550 = vmatpush1.xpose.msra.mxu0 0.0
    %551 = vmatprep.subr.mxu0 0.0
    %552 = vmatpush1.xpose.msra.mxu0 0.0
    %553 = vmatprep.subr.mxu0 0.0
    %554 = vmatpush1.xpose.msra.mxu0 0.0
    %555 = vmatprep.subr.mxu0 0.0
    %556 = vmatpush1.xpose.msra.mxu0 0.0
    %557 = vmatprep.subr.mxu0 0.0
    %558 = vmatpush1.xpose.msra.mxu0 0.0
    %559 = vmatprep.subr.mxu0 0.0
    %560 = vmatpush1.xpose.msra.mxu0 0.0
    %561 = vmatprep.subr.mxu0 0.0
    %562 = vmatpush1.xpose.msra.mxu0 0.0
    %563 = vmatprep.subr.mxu0 0.0
    %564 = vmatpush1.xpose.msra.mxu0 0.0
    %565 = vmatprep.subr.mxu0 0.0
    %566 = vmatpush1.xpose.msra.mxu0 0.0
    %567 = vmatprep.subr.mxu0 0.0
    %568 = vmatpush1.xpose.msra.mxu0 0.0
    %569 = vmatprep.subr.mxu0 0.0
    %570 = vmatpush1.xpose.msra.mxu0 0.0
    %571 = vmatprep.subr.mxu0 0.0
    %572 = vmatpush1.xpose.msra.mxu0 0.0
    %573 = vmatprep.subr.mxu0 0.0
    %574 = vmatpush1.xpose.msra.mxu0 0.0
    %575 = vmatprep.subr.mxu0 0.0
    %576 = vmatpush1.xpose.msra.mxu0 0.0
    %577 = vmatprep.subr.mxu0 0.0
    %578 = vmatpush1.xpose.msra.mxu0 0.0
    %579 = vmatprep.subr.mxu0 0.0
    %580 = vmatpush1.xpose.msra.mxu0 0.0
    %581 = vmatprep.subr.mxu0 0.0
    %582 = vmatpush1.xpose.msra.mxu0 0.0
    %583 = vmatprep.subr.mxu0 0.0
    %584 = vmatpush1.xpose.msra.mxu0 0.0
    %585 = vmatprep.subr.mxu0 0.0
    %586 = vmatpush1.xpose.msra.mxu0 0.0
    %587 = vmatprep.subr.mxu0 0.0
    %588 = vmatpush1.xpose.msra.mxu0 0.0
    %589 = vmatprep.subr.mxu0 0.0
    %590 = vmatpush1.xpose.msra.mxu0 0.0
    %591 = vmatprep.subr.mxu0 0.0
    %592 = vmatpush1.xpose.msra.mxu0 0.0
    %593 = vmatprep.subr.mxu0 0.0
    %594 = vmatpush1.xpose.msra.mxu0 0.0
    %595 = vmatprep.subr.mxu0 0.0
    %596 = vmatpush1.xpose.msra.mxu0 0.0
    %597 = vmatprep.subr.mxu0 0.0
    %598 = vmatpush1.xpose.msra.mxu0 0.0
    %599 = vmatprep.mubr.f32.mxu0 0.0
    %600 = vmatmul.mubr.f32.gmra.mrb[0].mxu0 %v531
    %v601 = vpop.f32.mrb[0].mxu0
    %v602 = vadd.f32 %v58, %v601
    %v603 = vpop.f32.mrb[0].mxu0
    %604 = vdwg.mxu0
    %605 = vrot.lane.b32.xlu0 %v215, 96
    %v606 = vpop.permute.xlu0 %605
    %v607 = vsel %vm226, %v201, 0
    %v609 = vsel %vm226, %v606, 0
    %611 = vmatprep.subr.mxu0 0.0
    %612 = vmatpush1.xpose.msra.mxu0 %v609
    %613 = vmatprep.subr.mxu0 0.0
    %614 = vmatpush1.xpose.msra.mxu0 0.0
    %615 = vmatprep.subr.mxu0 0.0
    %616 = vmatpush1.xpose.msra.mxu0 0.0
    %617 = vmatprep.subr.mxu0 0.0
    %618 = vmatpush1.xpose.msra.mxu0 0.0
    %619 = vmatprep.subr.mxu0 0.0
    %620 = vmatpush1.xpose.msra.mxu0 0.0
    %621 = vmatprep.subr.mxu0 0.0
    %622 = vmatpush1.xpose.msra.mxu0 0.0
    %623 = vmatprep.subr.mxu0 0.0
    %624 = vmatpush1.xpose.msra.mxu0 0.0
    %625 = vmatprep.subr.mxu0 0.0
    %626 = vmatpush1.xpose.msra.mxu0 0.0
    %627 = vmatprep.subr.mxu0 0.0
    %628 = vmatpush1.xpose.msra.mxu0 0.0
    %629 = vmatprep.subr.mxu0 0.0
    %630 = vmatpush1.xpose.msra.mxu0 0.0
    %631 = vmatprep.subr.mxu0 0.0
    %632 = vmatpush1.xpose.msra.mxu0 0.0
    %633 = vmatprep.subr.mxu0 0.0
    %634 = vmatpush1.xpose.msra.mxu0 0.0
    %635 = vmatprep.subr.mxu0 0.0
    %636 = vmatpush1.xpose.msra.mxu0 0.0
    %637 = vmatprep.subr.mxu0 0.0
    %638 = vmatpush1.xpose.msra.mxu0 0.0
    %639 = vmatprep.subr.mxu0 0.0
    %640 = vmatpush1.xpose.msra.mxu0 0.0
    %641 = vmatprep.subr.mxu0 0.0
    %642 = vmatpush1.xpose.msra.mxu0 0.0
    %643 = vmatprep.subr.mxu0 0.0
    %644 = vmatpush1.xpose.msra.mxu0 0.0
    %645 = vmatprep.subr.mxu0 0.0
    %646 = vmatpush1.xpose.msra.mxu0 0.0
    %647 = vmatprep.subr.mxu0 0.0
    %648 = vmatpush1.xpose.msra.mxu0 0.0
    %649 = vmatprep.subr.mxu0 0.0
    %650 = vmatpush1.xpose.msra.mxu0 0.0
    %651 = vmatprep.subr.mxu0 0.0
    %652 = vmatpush1.xpose.msra.mxu0 0.0
    %653 = vmatprep.subr.mxu0 0.0
    %654 = vmatpush1.xpose.msra.mxu0 0.0
    %655 = vmatprep.subr.mxu0 0.0
    %656 = vmatpush1.xpose.msra.mxu0 0.0
    %657 = vmatprep.subr.mxu0 0.0
    %658 = vmatpush1.xpose.msra.mxu0 0.0
    %659 = vmatprep.subr.mxu0 0.0
    %660 = vmatpush1.xpose.msra.mxu0 0.0
    %661 = vmatprep.subr.mxu0 0.0
    %662 = vmatpush1.xpose.msra.mxu0 0.0
    %663 = vmatprep.subr.mxu0 0.0
    %664 = vmatpush1.xpose.msra.mxu0 0.0
    %665 = vmatprep.subr.mxu0 0.0
    %666 = vmatpush1.xpose.msra.mxu0 0.0
    %667 = vmatprep.subr.mxu0 0.0
    %668 = vmatpush1.xpose.msra.mxu0 0.0
    %669 = vmatprep.subr.mxu0 0.0
    %670 = vmatpush1.xpose.msra.mxu0 0.0
    %671 = vmatprep.subr.mxu0 0.0
    %672 = vmatpush1.xpose.msra.mxu0 0.0
    %673 = vmatprep.subr.mxu0 0.0
    %674 = vmatpush1.xpose.msra.mxu0 0.0
    %675 = vmatprep.mubr.f32.mxu0 0.0
    %676 = vmatmul.mubr.f32.gmra.mrb[0].mxu0 %v607
    %v677 = vpop.f32.mrb[0].mxu0
    %v678 = vadd.f32 %v59, %v677
    %v679 = vpop.f32.mrb[0].mxu0
    %680 = vdwg.mxu0
    %681 = vrot.lane.b32.xlu0 %v219, 96
    %v682 = vpop.permute.xlu0 %681
    %v683 = vsel %vm226, %v205, 0
    %v685 = vsel %vm226, %v682, 0
    %687 = vmatprep.subr.mxu0 0.0
    %688 = vmatpush1.xpose.msra.mxu0 %v685
    %689 = vmatprep.subr.mxu0 0.0
    %690 = vmatpush1.xpose.msra.mxu0 0.0
    %691 = vmatprep.subr.mxu0 0.0
    %692 = vmatpush1.xpose.msra.mxu0 0.0
    %693 = vmatprep.subr.mxu0 0.0
    %694 = vmatpush1.xpose.msra.mxu0 0.0
    %695 = vmatprep.subr.mxu0 0.0
    %696 = vmatpush1.xpose.msra.mxu0 0.0
    %697 = vmatprep.subr.mxu0 0.0
    %698 = vmatpush1.xpose.msra.mxu0 0.0
    %699 = vmatprep.subr.mxu0 0.0
    %700 = vmatpush1.xpose.msra.mxu0 0.0
    %701 = vmatprep.subr.mxu0 0.0
    %702 = vmatpush1.xpose.msra.mxu0 0.0
    %703 = vmatprep.subr.mxu0 0.0
    %704 = vmatpush1.xpose.msra.mxu0 0.0
    %705 = vmatprep.subr.mxu0 0.0
    %706 = vmatpush1.xpose.msra.mxu0 0.0
    %707 = vmatprep.subr.mxu0 0.0
    %708 = vmatpush1.xpose.msra.mxu0 0.0
    %709 = vmatprep.subr.mxu0 0.0
    %710 = vmatpush1.xpose.msra.mxu0 0.0
    %711 = vmatprep.subr.mxu0 0.0
    %712 = vmatpush1.xpose.msra.mxu0 0.0
    %713 = vmatprep.subr.mxu0 0.0
    %714 = vmatpush1.xpose.msra.mxu0 0.0
    %715 = vmatprep.subr.mxu0 0.0
    %716 = vmatpush1.xpose.msra.mxu0 0.0
    %717 = vmatprep.subr.mxu0 0.0
    %718 = vmatpush1.xpose.msra.mxu0 0.0
    %719 = vmatprep.subr.mxu0 0.0
    %720 = vmatpush1.xpose.msra.mxu0 0.0
    %721 = vmatprep.subr.mxu0 0.0
    %722 = vmatpush1.xpose.msra.mxu0 0.0
    %723 = vmatprep.subr.mxu0 0.0
    %724 = vmatpush1.xpose.msra.mxu0 0.0
    %725 = vmatprep.subr.mxu0 0.0
    %726 = vmatpush1.xpose.msra.mxu0 0.0
    %727 = vmatprep.subr.mxu0 0.0
    %728 = vmatpush1.xpose.msra.mxu0 0.0
    %729 = vmatprep.subr.mxu0 0.0
    %730 = vmatpush1.xpose.msra.mxu0 0.0
    %731 = vmatprep.subr.mxu0 0.0
    %732 = vmatpush1.xpose.msra.mxu0 0.0
    %733 = vmatprep.subr.mxu0 0.0
    %734 = vmatpush1.xpose.msra.mxu0 0.0
    %735 = vmatprep.subr.mxu0 0.0
    %736 = vmatpush1.xpose.msra.mxu0 0.0
    %737 = vmatprep.subr.mxu0 0.0
    %738 = vmatpush1.xpose.msra.mxu0 0.0
    %739 = vmatprep.subr.mxu0 0.0
    %740 = vmatpush1.xpose.msra.mxu0 0.0
    %741 = vmatprep.subr.mxu0 0.0
    %742 = vmatpush1.xpose.msra.mxu0 0.0
    %743 = vmatprep.subr.mxu0 0.0
    %744 = vmatpush1.xpose.msra.mxu0 0.0
    %745 = vmatprep.subr.mxu0 0.0
    %746 = vmatpush1.xpose.msra.mxu0 0.0
    %747 = vmatprep.subr.mxu0 0.0
    %748 = vmatpush1.xpose.msra.mxu0 0.0
    %749 = vmatprep.subr.mxu0 0.0
    %750 = vmatpush1.xpose.msra.mxu0 0.0
    %751 = vmatprep.mubr.f32.mxu0 0.0
    %752 = vmatmul.mubr.f32.gmra.mrb[0].mxu0 %v683
    %v753 = vpop.f32.mrb[0].mxu0
    %v754 = vadd.f32 %v60, %v753
    %v755 = vpop.f32.mrb[0].mxu0
    %756 = vdwg.mxu0
    %757 = vrot.lane.b32.xlu0 %v223, 96
    %v758 = vpop.permute.xlu0 %757
    %v759 = vsel %vm226, %v209, 0
    %v761 = vsel %vm226, %v758, 0
    %763 = vmatprep.subr.mxu0 0.0
    %764 = vmatpush1.xpose.msra.mxu0 %v761
    %765 = vmatprep.subr.mxu0 0.0
    %766 = vmatpush1.xpose.msra.mxu0 0.0
    %767 = vmatprep.subr.mxu0 0.0
    %768 = vmatpush1.xpose.msra.mxu0 0.0
    %769 = vmatprep.subr.mxu0 0.0
    %770 = vmatpush1.xpose.msra.mxu0 0.0
    %771 = vmatprep.subr.mxu0 0.0
    %772 = vmatpush1.xpose.msra.mxu0 0.0
    %773 = vmatprep.subr.mxu0 0.0
    %774 = vmatpush1.xpose.msra.mxu0 0.0
    %775 = vmatprep.subr.mxu0 0.0
    %776 = vmatpush1.xpose.msra.mxu0 0.0
    %777 = vmatprep.subr.mxu0 0.0
    %778 = vmatpush1.xpose.msra.mxu0 0.0
    %779 = vmatprep.subr.mxu0 0.0
    %780 = vmatpush1.xpose.msra.mxu0 0.0
    %781 = vmatprep.subr.mxu0 0.0
    %782 = vmatpush1.xpose.msra.mxu0 0.0
    %783 = vmatprep.subr.mxu0 0.0
    %784 = vmatpush1.xpose.msra.mxu0 0.0
    %785 = vmatprep.subr.mxu0 0.0
    %786 = vmatpush1.xpose.msra.mxu0 0.0
    %787 = vmatprep.subr.mxu0 0.0
    %788 = vmatpush1.xpose.msra.mxu0 0.0
    %789 = vmatprep.subr.mxu0 0.0
    %790 = vmatpush1.xpose.msra.mxu0 0.0
    %791 = vmatprep.subr.mxu0 0.0
    %792 = vmatpush1.xpose.msra.mxu0 0.0
    %793 = vmatprep.subr.mxu0 0.0
    %794 = vmatpush1.xpose.msra.mxu0 0.0
    %795 = vmatprep.subr.mxu0 0.0
    %796 = vmatpush1.xpose.msra.mxu0 0.0
    %797 = vmatprep.subr.mxu0 0.0
    %798 = vmatpush1.xpose.msra.mxu0 0.0
    %799 = vmatprep.subr.mxu0 0.0
    %800 = vmatpush1.xpose.msra.mxu0 0.0
    %801 = vmatprep.subr.mxu0 0.0
    %802 = vmatpush1.xpose.msra.mxu0 0.0
    %803 = vmatprep.subr.mxu0 0.0
    %804 = vmatpush1.xpose.msra.mxu0 0.0
    %805 = vmatprep.subr.mxu0 0.0
    %806 = vmatpush1.xpose.msra.mxu0 0.0
    %807 = vmatprep.subr.mxu0 0.0
    %808 = vmatpush1.xpose.msra.mxu0 0.0
    %809 = vmatprep.subr.mxu0 0.0
    %810 = vmatpush1.xpose.msra.mxu0 0.0
    %811 = vmatprep.subr.mxu0 0.0
    %812 = vmatpush1.xpose.msra.mxu0 0.0
    %813 = vmatprep.subr.mxu0 0.0
    %814 = vmatpush1.xpose.msra.mxu0 0.0
    %815 = vmatprep.subr.mxu0 0.0
    %816 = vmatpush1.xpose.msra.mxu0 0.0
    %817 = vmatprep.subr.mxu0 0.0
    %818 = vmatpush1.xpose.msra.mxu0 0.0
    %819 = vmatprep.subr.mxu0 0.0
    %820 = vmatpush1.xpose.msra.mxu0 0.0
    %821 = vmatprep.subr.mxu0 0.0
    %822 = vmatpush1.xpose.msra.mxu0 0.0
    %823 = vmatprep.subr.mxu0 0.0
    %824 = vmatpush1.xpose.msra.mxu0 0.0
    %825 = vmatprep.subr.mxu0 0.0
    %826 = vmatpush1.xpose.msra.mxu0 0.0
    %827 = vmatprep.mubr.f32.mxu0 0.0
    %828 = vmatmul.mubr.f32.gmra.mrb[0].mxu0 %v759
    %v829 = vpop.f32.mrb[0].mxu0
    %v830 = vadd.f32 %v61, %v829
    %v831 = vpop.f32.mrb[0].mxu0
    %832 = vdwg.mxu0
    %v833 = vsel %vm226, %v298, -inf
    %834 = vmax.xlane.f32.xlu0 %v833
    %v835 = vpop.xlane.xlu0 %834
    %v836 = vsel %vm226, %v374, -inf
    %837 = vmax.xlane.f32.xlu0 %v836
    %v838 = vpop.xlane.xlu0 %837
    %v839 = vsel %vm226, %v450, -inf
    %840 = vmax.xlane.f32.xlu0 %v839
    %v841 = vpop.xlane.xlu0 %840
    %v842 = vsel %vm226, %v526, -inf
    %843 = vmax.xlane.f32.xlu0 %v842
    %v844 = vpop.xlane.xlu0 %843
    %v845 = vsel %vm226, %v602, -inf
    %846 = vmax.xlane.f32.xlu0 %v845
    %v847 = vpop.xlane.xlu0 %846
    %v848 = vsel %vm226, %v678, -inf
    %849 = vmax.xlane.f32.xlu0 %v848
    %v850 = vpop.xlane.xlu0 %849
    %v851 = vsel %vm226, %v754, -inf
    %852 = vmax.xlane.f32.xlu0 %v851
    %v853 = vpop.xlane.xlu0 %852
    %v854 = vsel %vm226, %v830, -inf
    %855 = vmax.xlane.f32.xlu0 %v854
    %v856 = vpop.xlane.xlu0 %855
    %v857 = vsub.f32 %v298, %v835
    %v858 = vsub.f32 %v374, %v838
    %v859 = vsub.f32 %v450, %v841
    %v860 = vsub.f32 %v526, %v844
    %v861 = vsub.f32 %v602, %v847
    %v862 = vsub.f32 %v678, %v850
    %v863 = vsub.f32 %v754, %v853
    %v864 = vsub.f32 %v830, %v856
    %v865 = vmul.f32 %v857, 1.442695
    %v866 = vpow.pop %v865
    %v867 = vmul.f32 %v858, 1.442695
    %v868 = vpow.pop %v867
    %v869 = vmul.f32 %v859, 1.442695
    %v870 = vpow.pop %v869
    %v871 = vmul.f32 %v860, 1.442695
    %v872 = vpow.pop %v871
    %v873 = vmul.f32 %v861, 1.442695
    %v874 = vpow.pop %v873
    %v875 = vmul.f32 %v862, 1.442695
    %v876 = vpow.pop %v875
    %v877 = vmul.f32 %v863, 1.442695
    %v878 = vpow.pop %v877
    %v879 = vmul.f32 %v864, 1.442695
    %v880 = vpow.pop %v879
    %v881 = vsel %vm226, %v866, 0.0
    %882 = vadd.xlane.f32.xlu0 %v881
    %v883 = vpop.xlane.xlu0 %882
    %v884 = vsel %vm226, %v868, 0.0
    %885 = vadd.xlane.f32.xlu0 %v884
    %v886 = vpop.xlane.xlu0 %885
    %v887 = vsel %vm226, %v870, 0.0
    %888 = vadd.xlane.f32.xlu0 %v887
    %v889 = vpop.xlane.xlu0 %888
    %v890 = vsel %vm226, %v872, 0.0
    %891 = vadd.xlane.f32.xlu0 %v890
    %v892 = vpop.xlane.xlu0 %891
    %v893 = vsel %vm226, %v874, 0.0
    %894 = vadd.xlane.f32.xlu0 %v893
    %v895 = vpop.xlane.xlu0 %894
    %v896 = vsel %vm226, %v876, 0.0
    %897 = vadd.xlane.f32.xlu0 %v896
    %v898 = vpop.xlane.xlu0 %897
    %v899 = vsel %vm226, %v878, 0.0
    %900 = vadd.xlane.f32.xlu0 %v899
    %v901 = vpop.xlane.xlu0 %900
    %v902 = vsel %vm226, %v880, 0.0
    %903 = vadd.xlane.f32.xlu0 %v902
    %v904 = vpop.xlane.xlu0 %903
    %v905 = vrcp.pop %v883
    %v906 = vrcp.pop %v886
    %v907 = vrcp.pop %v889
    %v908 = vrcp.pop %v892
    %v909 = vrcp.pop %v895
    %v910 = vrcp.pop %v898
    %v911 = vrcp.pop %v901
    %v912 = vrcp.pop %v904
    %v913 = vmul.f32 %v866, %v905
    %v914 = vmul.f32 %v868, %v906
    %v915 = vmul.f32 %v870, %v907
    %v916 = vmul.f32 %v872, %v908
    %v917 = vmul.f32 %v874, %v909
    %v918 = vmul.f32 %v876, %v910
    %v919 = vmul.f32 %v878, %v911
    %v920 = vmul.f32 %v880, %v912
    %921 = vrot.lane.b32.xlu0 %v192, 64
    %v922 = vpop.permute.xlu0 %921
    %v925 = vsel %vm226, %v913, 0
    %927 = vmatprep.subr.mxu0 0.0
    %928 = vmatpush1.msra.mxu0 %v922
    %929 = vmatprep.subr.mxu0 0.0
    %930 = vmatpush1.msra.mxu0 0.0
    %931 = vmatprep.subr.mxu0 0.0
    %932 = vmatpush1.msra.mxu0 0.0
    %933 = vmatprep.subr.mxu0 0.0
    %934 = vmatpush1.msra.mxu0 0.0
    %935 = vmatprep.subr.mxu0 0.0
    %936 = vmatpush1.msra.mxu0 0.0
    %937 = vmatprep.subr.mxu0 0.0
    %938 = vmatpush1.msra.mxu0 0.0
    %939 = vmatprep.subr.mxu0 0.0
    %940 = vmatpush1.msra.mxu0 0.0
    %941 = vmatprep.subr.mxu0 0.0
    %942 = vmatpush1.msra.mxu0 0.0
    %943 = vmatprep.subr.mxu0 0.0
    %944 = vmatpush1.msra.mxu0 0.0
    %945 = vmatprep.subr.mxu0 0.0
    %946 = vmatpush1.msra.mxu0 0.0
    %947 = vmatprep.subr.mxu0 0.0
    %948 = vmatpush1.msra.mxu0 0.0
    %949 = vmatprep.subr.mxu0 0.0
    %950 = vmatpush1.msra.mxu0 0.0
    %951 = vmatprep.subr.mxu0 0.0
    %952 = vmatpush1.msra.mxu0 0.0
    %953 = vmatprep.subr.mxu0 0.0
    %954 = vmatpush1.msra.mxu0 0.0
    %955 = vmatprep.subr.mxu0 0.0
    %956 = vmatpush1.msra.mxu0 0.0
    %957 = vmatprep.subr.mxu0 0.0
    %958 = vmatpush1.msra.mxu0 0.0
    %959 = vmatprep.subr.mxu0 0.0
    %960 = vmatpush1.msra.mxu0 0.0
    %961 = vmatprep.subr.mxu0 0.0
    %962 = vmatpush1.msra.mxu0 0.0
    %963 = vmatprep.subr.mxu0 0.0
    %964 = vmatpush1.msra.mxu0 0.0
    %965 = vmatprep.subr.mxu0 0.0
    %966 = vmatpush1.msra.mxu0 0.0
    %967 = vmatprep.subr.mxu0 0.0
    %968 = vmatpush1.msra.mxu0 0.0
    %969 = vmatprep.subr.mxu0 0.0
    %970 = vmatpush1.msra.mxu0 0.0
    %971 = vmatprep.subr.mxu0 0.0
    %972 = vmatpush1.msra.mxu0 0.0
    %973 = vmatprep.subr.mxu0 0.0
    %974 = vmatpush1.msra.mxu0 0.0
    %975 = vmatprep.subr.mxu0 0.0
    %976 = vmatpush1.msra.mxu0 0.0
    %977 = vmatprep.subr.mxu0 0.0
    %978 = vmatpush1.msra.mxu0 0.0
    %979 = vmatprep.subr.mxu0 0.0
    %980 = vmatpush1.msra.mxu0 0.0
    %981 = vmatprep.subr.mxu0 0.0
    %982 = vmatpush1.msra.mxu0 0.0
    %983 = vmatprep.subr.mxu0 0.0
    %984 = vmatpush1.msra.mxu0 0.0
    %985 = vmatprep.subr.mxu0 0.0
    %986 = vmatpush1.msra.mxu0 0.0
    %987 = vmatprep.subr.mxu0 0.0
    %988 = vmatpush1.msra.mxu0 0.0
    %989 = vmatprep.subr.mxu0 0.0
    %990 = vmatpush1.msra.mxu0 0.0
    %991 = vmatprep.mubr.f32.mxu0 0.0
    %992 = vmatmul.mubr.f32.gmra.mrb[0].mxu0 %v925
    %v993 = vpop.f32.mrb[0].mxu0
    %v994 = vadd.f32 0.0, %v993
    %v995 = vpop.f32.mrb[0].mxu0
    %996 = vdwg.mxu0
    %997 = vrot.lane.b32.xlu0 %v213, 64
    %v998 = vpop.permute.xlu0 %997
    %v1001 = vsel %vm226, %v914, 0
    %1003 = vmatprep.subr.mxu0 0.0
    %1004 = vmatpush1.msra.mxu0 %v998
    %1005 = vmatprep.subr.mxu0 0.0
    %1006 = vmatpush1.msra.mxu0 0.0
    %1007 = vmatprep.subr.mxu0 0.0
    %1008 = vmatpush1.msra.mxu0 0.0
    %1009 = vmatprep.subr.mxu0 0.0
    %1010 = vmatpush1.msra.mxu0 0.0
    %1011 = vmatprep.subr.mxu0 0.0
    %1012 = vmatpush1.msra.mxu0 0.0
    %1013 = vmatprep.subr.mxu0 0.0
    %1014 = vmatpush1.msra.mxu0 0.0
    %1015 = vmatprep.subr.mxu0 0.0
    %1016 = vmatpush1.msra.mxu0 0.0
    %1017 = vmatprep.subr.mxu0 0.0
    %1018 = vmatpush1.msra.mxu0 0.0
    %1019 = vmatprep.subr.mxu0 0.0
    %1020 = vmatpush1.msra.mxu0 0.0
    %1021 = vmatprep.subr.mxu0 0.0
    %1022 = vmatpush1.msra.mxu0 0.0
    %1023 = vmatprep.subr.mxu0 0.0
    %1024 = vmatpush1.msra.mxu0 0.0
    %1025 = vmatprep.subr.mxu0 0.0
    %1026 = vmatpush1.msra.mxu0 0.0
    %1027 = vmatprep.subr.mxu0 0.0
    %1028 = vmatpush1.msra.mxu0 0.0
    %1029 = vmatprep.subr.mxu0 0.0
    %1030 = vmatpush1.msra.mxu0 0.0
    %1031 = vmatprep.subr.mxu0 0.0
    %1032 = vmatpush1.msra.mxu0 0.0
    %1033 = vmatprep.subr.mxu0 0.0
    %1034 = vmatpush1.msra.mxu0 0.0
    %1035 = vmatprep.subr.mxu0 0.0
    %1036 = vmatpush1.msra.mxu0 0.0
    %1037 = vmatprep.subr.mxu0 0.0
    %1038 = vmatpush1.msra.mxu0 0.0
    %1039 = vmatprep.subr.mxu0 0.0
    %1040 = vmatpush1.msra.mxu0 0.0
    %1041 = vmatprep.subr.mxu0 0.0
    %1042 = vmatpush1.msra.mxu0 0.0
    %1043 = vmatprep.subr.mxu0 0.0
    %1044 = vmatpush1.msra.mxu0 0.0
    %1045 = vmatprep.subr.mxu0 0.0
    %1046 = vmatpush1.msra.mxu0 0.0
    %1047 = vmatprep.subr.mxu0 0.0
    %1048 = vmatpush1.msra.mxu0 0.0
    %1049 = vmatprep.subr.mxu0 0.0
    %1050 = vmatpush1.msra.mxu0 0.0
    %1051 = vmatprep.subr.mxu0 0.0
    %1052 = vmatpush1.msra.mxu0 0.0
    %1053 = vmatprep.subr.mxu0 0.0
    %1054 = vmatpush1.msra.mxu0 0.0
    %1055 = vmatprep.subr.mxu0 0.0
    %1056 = vmatpush1.msra.mxu0 0.0
    %1057 = vmatprep.subr.mxu0 0.0
    %1058 = vmatpush1.msra.mxu0 0.0
    %1059 = vmatprep.subr.mxu0 0.0
    %1060 = vmatpush1.msra.mxu0 0.0
    %1061 = vmatprep.subr.mxu0 0.0
    %1062 = vmatpush1.msra.mxu0 0.0
    %1063 = vmatprep.subr.mxu0 0.0
    %1064 = vmatpush1.msra.mxu0 0.0
    %1065 = vmatprep.subr.mxu0 0.0
    %1066 = vmatpush1.msra.mxu0 0.0
    %1067 = vmatprep.mubr.f32.mxu0 0.0
    %1068 = vmatmul.mubr.f32.gmra.mrb[0].mxu0 %v1001
    %v1069 = vpop.f32.mrb[0].mxu0
    %v1070 = vadd.f32 0.0, %v1069
    %v1071 = vpop.f32.mrb[0].mxu0
    %1072 = vdwg.mxu0
    %1073 = vrot.lane.b32.xlu0 %v217, 64
    %v1074 = vpop.permute.xlu0 %1073
    %v1077 = vsel %vm226, %v915, 0
    %1079 = vmatprep.subr.mxu0 0.0
    %1080 = vmatpush1.msra.mxu0 %v1074
    %1081 = vmatprep.subr.mxu0 0.0
    %1082 = vmatpush1.msra.mxu0 0.0
    %1083 = vmatprep.subr.mxu0 0.0
    %1084 = vmatpush1.msra.mxu0 0.0
    %1085 = vmatprep.subr.mxu0 0.0
    %1086 = vmatpush1.msra.mxu0 0.0
    %1087 = vmatprep.subr.mxu0 0.0
    %1088 = vmatpush1.msra.mxu0 0.0
    %1089 = vmatprep.subr.mxu0 0.0
    %1090 = vmatpush1.msra.mxu0 0.0
    %1091 = vmatprep.subr.mxu0 0.0
    %1092 = vmatpush1.msra.mxu0 0.0
    %1093 = vmatprep.subr.mxu0 0.0
    %1094 = vmatpush1.msra.mxu0 0.0
    %1095 = vmatprep.subr.mxu0 0.0
    %1096 = vmatpush1.msra.mxu0 0.0
    %1097 = vmatprep.subr.mxu0 0.0
    %1098 = vmatpush1.msra.mxu0 0.0
    %1099 = vmatprep.subr.mxu0 0.0
    %1100 = vmatpush1.msra.mxu0 0.0
    %1101 = vmatprep.subr.mxu0 0.0
    %1102 = vmatpush1.msra.mxu0 0.0
    %1103 = vmatprep.subr.mxu0 0.0
    %1104 = vmatpush1.msra.mxu0 0.0
    %1105 = vmatprep.subr.mxu0 0.0
    %1106 = vmatpush1.msra.mxu0 0.0
    %1107 = vmatprep.subr.mxu0 0.0
    %1108 = vmatpush1.msra.mxu0 0.0
    %1109 = vmatprep.subr.mxu0 0.0
    %1110 = vmatpush1.msra.mxu0 0.0
    %1111 = vmatprep.subr.mxu0 0.0
    %1112 = vmatpush1.msra.mxu0 0.0
    %1113 = vmatprep.subr.mxu0 0.0
    %1114 = vmatpush1.msra.mxu0 0.0
    %1115 = vmatprep.subr.mxu0 0.0
    %1116 = vmatpush1.msra.mxu0 0.0
    %1117 = vmatprep.subr.mxu0 0.0
    %1118 = vmatpush1.msra.mxu0 0.0
    %1119 = vmatprep.subr.mxu0 0.0
    %1120 = vmatpush1.msra.mxu0 0.0
    %1121 = vmatprep.subr.mxu0 0.0
    %1122 = vmatpush1.msra.mxu0 0.0
    %1123 = vmatprep.subr.mxu0 0.0
    %1124 = vmatpush1.msra.mxu0 0.0
    %1125 = vmatprep.subr.mxu0 0.0
    %1126 = vmatpush1.msra.mxu0 0.0
    %1127 = vmatprep.subr.mxu0 0.0
    %1128 = vmatpush1.msra.mxu0 0.0
    %1129 = vmatprep.subr.mxu0 0.0
    %1130 = vmatpush1.msra.mxu0 0.0
    %1131 = vmatprep.subr.mxu0 0.0
    %1132 = vmatpush1.msra.mxu0 0.0
    %1133 = vmatprep.subr.mxu0 0.0
    %1134 = vmatpush1.msra.mxu0 0.0
    %1135 = vmatprep.subr.mxu0 0.0
    %1136 = vmatpush1.msra.mxu0 0.0
    %1137 = vmatprep.subr.mxu0 0.0
    %1138 = vmatpush1.msra.mxu0 0.0
    %1139 = vmatprep.subr.mxu0 0.0
    %1140 = vmatpush1.msra.mxu0 0.0
    %1141 = vmatprep.subr.mxu0 0.0
    %1142 = vmatpush1.msra.mxu0 0.0
    %1143 = vmatprep.mubr.f32.mxu0 0.0
    %1144 = vmatmul.mubr.f32.gmra.mrb[0].mxu0 %v1077
    %v1145 = vpop.f32.mrb[0].mxu0
    %v1146 = vadd.f32 0.0, %v1145
    %v1147 = vpop.f32.mrb[0].mxu0
    %1148 = vdwg.mxu0
    %1149 = vrot.lane.b32.xlu0 %v221, 64
    %v1150 = vpop.permute.xlu0 %1149
    %v1153 = vsel %vm226, %v916, 0
    %1155 = vmatprep.subr.mxu0 0.0
    %1156 = vmatpush1.msra.mxu0 %v1150
    %1157 = vmatprep.subr.mxu0 0.0
    %1158 = vmatpush1.msra.mxu0 0.0
    %1159 = vmatprep.subr.mxu0 0.0
    %1160 = vmatpush1.msra.mxu0 0.0
    %1161 = vmatprep.subr.mxu0 0.0
    %1162 = vmatpush1.msra.mxu0 0.0
    %1163 = vmatprep.subr.mxu0 0.0
    %1164 = vmatpush1.msra.mxu0 0.0
    %1165 = vmatprep.subr.mxu0 0.0
    %1166 = vmatpush1.msra.mxu0 0.0
    %1167 = vmatprep.subr.mxu0 0.0
    %1168 = vmatpush1.msra.mxu0 0.0
    %1169 = vmatprep.subr.mxu0 0.0
    %1170 = vmatpush1.msra.mxu0 0.0
    %1171 = vmatprep.subr.mxu0 0.0
    %1172 = vmatpush1.msra.mxu0 0.0
    %1173 = vmatprep.subr.mxu0 0.0
    %1174 = vmatpush1.msra.mxu0 0.0
    %1175 = vmatprep.subr.mxu0 0.0
    %1176 = vmatpush1.msra.mxu0 0.0
    %1177 = vmatprep.subr.mxu0 0.0
    %1178 = vmatpush1.msra.mxu0 0.0
    %1179 = vmatprep.subr.mxu0 0.0
    %1180 = vmatpush1.msra.mxu0 0.0
    %1181 = vmatprep.subr.mxu0 0.0
    %1182 = vmatpush1.msra.mxu0 0.0
    %1183 = vmatprep.subr.mxu0 0.0
    %1184 = vmatpush1.msra.mxu0 0.0
    %1185 = vmatprep.subr.mxu0 0.0
    %1186 = vmatpush1.msra.mxu0 0.0
    %1187 = vmatprep.subr.mxu0 0.0
    %1188 = vmatpush1.msra.mxu0 0.0
    %1189 = vmatprep.subr.mxu0 0.0
    %1190 = vmatpush1.msra.mxu0 0.0
    %1191 = vmatprep.subr.mxu0 0.0
    %1192 = vmatpush1.msra.mxu0 0.0
    %1193 = vmatprep.subr.mxu0 0.0
    %1194 = vmatpush1.msra.mxu0 0.0
    %1195 = vmatprep.subr.mxu0 0.0
    %1196 = vmatpush1.msra.mxu0 0.0
    %1197 = vmatprep.subr.mxu0 0.0
    %1198 = vmatpush1.msra.mxu0 0.0
    %1199 = vmatprep.subr.mxu0 0.0
    %1200 = vmatpush1.msra.mxu0 0.0
    %1201 = vmatprep.subr.mxu0 0.0
    %1202 = vmatpush1.msra.mxu0 0.0
    %1203 = vmatprep.subr.mxu0 0.0
    %1204 = vmatpush1.msra.mxu0 0.0
    %1205 = vmatprep.subr.mxu0 0.0
    %1206 = vmatpush1.msra.mxu0 0.0
    %1207 = vmatprep.subr.mxu0 0.0
    %1208 = vmatpush1.msra.mxu0 0.0
    %1209 = vmatprep.subr.mxu0 0.0
    %1210 = vmatpush1.msra.mxu0 0.0
    %1211 = vmatprep.subr.mxu0 0.0
    %1212 = vmatpush1.msra.mxu0 0.0
    %1213 = vmatprep.subr.mxu0 0.0
    %1214 = vmatpush1.msra.mxu0 0.0
    %1215 = vmatprep.subr.mxu0 0.0
    %1216 = vmatpush1.msra.mxu0 0.0
    %1217 = vmatprep.subr.mxu0 0.0
    %1218 = vmatpush1.msra.mxu0 0.0
    %1219 = vmatprep.mubr.f32.mxu0 0.0
    %1220 = vmatmul.mubr.f32.gmra.mrb[0].mxu0 %v1153
    %v1221 = vpop.f32.mrb[0].mxu0
    %v1222 = vadd.f32 0.0, %v1221
    %v1223 = vpop.f32.mrb[0].mxu0
    %1224 = vdwg.mxu0
    %1225 = vrot.lane.b32.xlu0 %v193, 64
    %v1226 = vpop.permute.xlu0 %1225
    %v1229 = vsel %vm226, %v917, 0
    %1231 = vmatprep.subr.mxu0 0.0
    %1232 = vmatpush1.msra.mxu0 %v1226
    %1233 = vmatprep.subr.mxu0 0.0
    %1234 = vmatpush1.msra.mxu0 0.0
    %1235 = vmatprep.subr.mxu0 0.0
    %1236 = vmatpush1.msra.mxu0 0.0
    %1237 = vmatprep.subr.mxu0 0.0
    %1238 = vmatpush1.msra.mxu0 0.0
    %1239 = vmatprep.subr.mxu0 0.0
    %1240 = vmatpush1.msra.mxu0 0.0
    %1241 = vmatprep.subr.mxu0 0.0
    %1242 = vmatpush1.msra.mxu0 0.0
    %1243 = vmatprep.subr.mxu0 0.0
    %1244 = vmatpush1.msra.mxu0 0.0
    %1245 = vmatprep.subr.mxu0 0.0
    %1246 = vmatpush1.msra.mxu0 0.0
    %1247 = vmatprep.subr.mxu0 0.0
    %1248 = vmatpush1.msra.mxu0 0.0
    %1249 = vmatprep.subr.mxu0 0.0
    %1250 = vmatpush1.msra.mxu0 0.0
    %1251 = vmatprep.subr.mxu0 0.0
    %1252 = vmatpush1.msra.mxu0 0.0
    %1253 = vmatprep.subr.mxu0 0.0
    %1254 = vmatpush1.msra.mxu0 0.0
    %1255 = vmatprep.subr.mxu0 0.0
    %1256 = vmatpush1.msra.mxu0 0.0
    %1257 = vmatprep.subr.mxu0 0.0
    %1258 = vmatpush1.msra.mxu0 0.0
    %1259 = vmatprep.subr.mxu0 0.0
    %1260 = vmatpush1.msra.mxu0 0.0
    %1261 = vmatprep.subr.mxu0 0.0
    %1262 = vmatpush1.msra.mxu0 0.0
    %1263 = vmatprep.subr.mxu0 0.0
    %1264 = vmatpush1.msra.mxu0 0.0
    %1265 = vmatprep.subr.mxu0 0.0
    %1266 = vmatpush1.msra.mxu0 0.0
    %1267 = vmatprep.subr.mxu0 0.0
    %1268 = vmatpush1.msra.mxu0 0.0
    %1269 = vmatprep.subr.mxu0 0.0
    %1270 = vmatpush1.msra.mxu0 0.0
    %1271 = vmatprep.subr.mxu0 0.0
    %1272 = vmatpush1.msra.mxu0 0.0
    %1273 = vmatprep.subr.mxu0 0.0
    %1274 = vmatpush1.msra.mxu0 0.0
    %1275 = vmatprep.subr.mxu0 0.0
    %1276 = vmatpush1.msra.mxu0 0.0
    %1277 = vmatprep.subr.mxu0 0.0
    %1278 = vmatpush1.msra.mxu0 0.0
    %1279 = vmatprep.subr.mxu0 0.0
    %1280 = vmatpush1.msra.mxu0 0.0
    %1281 = vmatprep.subr.mxu0 0.0
    %1282 = vmatpush1.msra.mxu0 0.0
    %1283 = vmatprep.subr.mxu0 0.0
    %1284 = vmatpush1.msra.mxu0 0.0
    %1285 = vmatprep.subr.mxu0 0.0
    %1286 = vmatpush1.msra.mxu0 0.0
    %1287 = vmatprep.subr.mxu0 0.0
    %1288 = vmatpush1.msra.mxu0 0.0
    %1289 = vmatprep.subr.mxu0 0.0
    %1290 = vmatpush1.msra.mxu0 0.0
    %1291 = vmatprep.subr.mxu0 0.0
    %1292 = vmatpush1.msra.mxu0 0.0
    %1293 = vmatprep.subr.mxu0 0.0
    %1294 = vmatpush1.msra.mxu0 0.0
    %1295 = vmatprep.mubr.f32.mxu0 0.0
    %1296 = vmatmul.mubr.f32.gmra.mrb[0].mxu0 %v1229
    %v1297 = vpop.f32.mrb[0].mxu0
    %v1298 = vadd.f32 0.0, %v1297
    %v1299 = vpop.f32.mrb[0].mxu0
    %1300 = vdwg.mxu0
    %1301 = vrot.lane.b32.xlu0 %v215, 64
    %v1302 = vpop.permute.xlu0 %1301
    %v1305 = vsel %vm226, %v918, 0
    %1307 = vmatprep.subr.mxu0 0.0
    %1308 = vmatpush1.msra.mxu0 %v1302
    %1309 = vmatprep.subr.mxu0 0.0
    %1310 = vmatpush1.msra.mxu0 0.0
    %1311 = vmatprep.subr.mxu0 0.0
    %1312 = vmatpush1.msra.mxu0 0.0
    %1313 = vmatprep.subr.mxu0 0.0
    %1314 = vmatpush1.msra.mxu0 0.0
    %1315 = vmatprep.subr.mxu0 0.0
    %1316 = vmatpush1.msra.mxu0 0.0
    %1317 = vmatprep.subr.mxu0 0.0
    %1318 = vmatpush1.msra.mxu0 0.0
    %1319 = vmatprep.subr.mxu0 0.0
    %1320 = vmatpush1.msra.mxu0 0.0
    %1321 = vmatprep.subr.mxu0 0.0
    %1322 = vmatpush1.msra.mxu0 0.0
    %1323 = vmatprep.subr.mxu0 0.0
    %1324 = vmatpush1.msra.mxu0 0.0
    %1325 = vmatprep.subr.mxu0 0.0
    %1326 = vmatpush1.msra.mxu0 0.0
    %1327 = vmatprep.subr.mxu0 0.0
    %1328 = vmatpush1.msra.mxu0 0.0
    %1329 = vmatprep.subr.mxu0 0.0
    %1330 = vmatpush1.msra.mxu0 0.0
    %1331 = vmatprep.subr.mxu0 0.0
    %1332 = vmatpush1.msra.mxu0 0.0
    %1333 = vmatprep.subr.mxu0 0.0
    %1334 = vmatpush1.msra.mxu0 0.0
    %1335 = vmatprep.subr.mxu0 0.0
    %1336 = vmatpush1.msra.mxu0 0.0
    %1337 = vmatprep.subr.mxu0 0.0
    %1338 = vmatpush1.msra.mxu0 0.0
    %1339 = vmatprep.subr.mxu0 0.0
    %1340 = vmatpush1.msra.mxu0 0.0
    %1341 = vmatprep.subr.mxu0 0.0
    %1342 = vmatpush1.msra.mxu0 0.0
    %1343 = vmatprep.subr.mxu0 0.0
    %1344 = vmatpush1.msra.mxu0 0.0
    %1345 = vmatprep.subr.mxu0 0.0
    %1346 = vmatpush1.msra.mxu0 0.0
    %1347 = vmatprep.subr.mxu0 0.0
    %1348 = vmatpush1.msra.mxu0 0.0
    %1349 = vmatprep.subr.mxu0 0.0
    %1350 = vmatpush1.msra.mxu0 0.0
    %1351 = vmatprep.subr.mxu0 0.0
    %1352 = vmatpush1.msra.mxu0 0.0
    %1353 = vmatprep.subr.mxu0 0.0
    %1354 = vmatpush1.msra.mxu0 0.0
    %1355 = vmatprep.subr.mxu0 0.0
    %1356 = vmatpush1.msra.mxu0 0.0
    %1357 = vmatprep.subr.mxu0 0.0
    %1358 = vmatpush1.msra.mxu0 0.0
    %1359 = vmatprep.subr.mxu0 0.0
    %1360 = vmatpush1.msra.mxu0 0.0
    %1361 = vmatprep.subr.mxu0 0.0
    %1362 = vmatpush1.msra.mxu0 0.0
    %1363 = vmatprep.subr.mxu0 0.0
    %1364 = vmatpush1.msra.mxu0 0.0
    %1365 = vmatprep.subr.mxu0 0.0
    %1366 = vmatpush1.msra.mxu0 0.0
    %1367 = vmatprep.subr.mxu0 0.0
    %1368 = vmatpush1.msra.mxu0 0.0
    %1369 = vmatprep.subr.mxu0 0.0
    %1370 = vmatpush1.msra.mxu0 0.0
    %1371 = vmatprep.mubr.f32.mxu0 0.0
    %1372 = vmatmul.mubr.f32.gmra.mrb[0].mxu0 %v1305
    %v1373 = vpop.f32.mrb[0].mxu0
    %v1374 = vadd.f32 0.0, %v1373
    %v1375 = vpop.f32.mrb[0].mxu0
    %1376 = vdwg.mxu0
    %1377 = vrot.lane.b32.xlu0 %v219, 64
    %v1378 = vpop.permute.xlu0 %1377
    %v1381 = vsel %vm226, %v919, 0
    %1383 = vmatprep.subr.mxu0 0.0
    %1384 = vmatpush1.msra.mxu0 %v1378
    %1385 = vmatprep.subr.mxu0 0.0
    %1386 = vmatpush1.msra.mxu0 0.0
    %1387 = vmatprep.subr.mxu0 0.0
    %1388 = vmatpush1.msra.mxu0 0.0
    %1389 = vmatprep.subr.mxu0 0.0
    %1390 = vmatpush1.msra.mxu0 0.0
    %1391 = vmatprep.subr.mxu0 0.0
    %1392 = vmatpush1.msra.mxu0 0.0
    %1393 = vmatprep.subr.mxu0 0.0
    %1394 = vmatpush1.msra.mxu0 0.0
    %1395 = vmatprep.subr.mxu0 0.0
    %1396 = vmatpush1.msra.mxu0 0.0
    %1397 = vmatprep.subr.mxu0 0.0
    %1398 = vmatpush1.msra.mxu0 0.0
    %1399 = vmatprep.subr.mxu0 0.0
    %1400 = vmatpush1.msra.mxu0 0.0
    %1401 = vmatprep.subr.mxu0 0.0
    %1402 = vmatpush1.msra.mxu0 0.0
    %1403 = vmatprep.subr.mxu0 0.0
    %1404 = vmatpush1.msra.mxu0 0.0
    %1405 = vmatprep.subr.mxu0 0.0
    %1406 = vmatpush1.msra.mxu0 0.0
    %1407 = vmatprep.subr.mxu0 0.0
    %1408 = vmatpush1.msra.mxu0 0.0
    %1409 = vmatprep.subr.mxu0 0.0
    %1410 = vmatpush1.msra.mxu0 0.0
    %1411 = vmatprep.subr.mxu0 0.0
    %1412 = vmatpush1.msra.mxu0 0.0
    %1413 = vmatprep.subr.mxu0 0.0
    %1414 = vmatpush1.msra.mxu0 0.0
    %1415 = vmatprep.subr.mxu0 0.0
    %1416 = vmatpush1.msra.mxu0 0.0
    %1417 = vmatprep.subr.mxu0 0.0
    %1418 = vmatpush1.msra.mxu0 0.0
    %1419 = vmatprep.subr.mxu0 0.0
    %1420 = vmatpush1.msra.mxu0 0.0
    %1421 = vmatprep.subr.mxu0 0.0
    %1422 = vmatpush1.msra.mxu0 0.0
    %1423 = vmatprep.subr.mxu0 0.0
    %1424 = vmatpush1.msra.mxu0 0.0
    %1425 = vmatprep.subr.mxu0 0.0
    %1426 = vmatpush1.msra.mxu0 0.0
    %1427 = vmatprep.subr.mxu0 0.0
    %1428 = vmatpush1.msra.mxu0 0.0
    %1429 = vmatprep.subr.mxu0 0.0
    %1430 = vmatpush1.msra.mxu0 0.0
    %1431 = vmatprep.subr.mxu0 0.0
    %1432 = vmatpush1.msra.mxu0 0.0
    %1433 = vmatprep.subr.mxu0 0.0
    %1434 = vmatpush1.msra.mxu0 0.0
    %1435 = vmatprep.subr.mxu0 0.0
    %1436 = vmatpush1.msra.mxu0 0.0
    %1437 = vmatprep.subr.mxu0 0.0
    %1438 = vmatpush1.msra.mxu0 0.0
    %1439 = vmatprep.subr.mxu0 0.0
    %1440 = vmatpush1.msra.mxu0 0.0
    %1441 = vmatprep.subr.mxu0 0.0
    %1442 = vmatpush1.msra.mxu0 0.0
    %1443 = vmatprep.subr.mxu0 0.0
    %1444 = vmatpush1.msra.mxu0 0.0
    %1445 = vmatprep.subr.mxu0 0.0
    %1446 = vmatpush1.msra.mxu0 0.0
    %1447 = vmatprep.mubr.f32.mxu0 0.0
    %1448 = vmatmul.mubr.f32.gmra.mrb[0].mxu0 %v1381
    %v1449 = vpop.f32.mrb[0].mxu0
    %v1450 = vadd.f32 0.0, %v1449
    %v1451 = vpop.f32.mrb[0].mxu0
    %1452 = vdwg.mxu0
    %1453 = vrot.lane.b32.xlu0 %v223, 64
    %v1454 = vpop.permute.xlu0 %1453
    %v1457 = vsel %vm226, %v920, 0
    %1459 = vmatprep.subr.mxu0 0.0
    %1460 = vmatpush1.msra.mxu0 %v1454
    %1461 = vmatprep.subr.mxu0 0.0
    %1462 = vmatpush1.msra.mxu0 0.0
    %1463 = vmatprep.subr.mxu0 0.0
    %1464 = vmatpush1.msra.mxu0 0.0
    %1465 = vmatprep.subr.mxu0 0.0
    %1466 = vmatpush1.msra.mxu0 0.0
    %1467 = vmatprep.subr.mxu0 0.0
    %1468 = vmatpush1.msra.mxu0 0.0
    %1469 = vmatprep.subr.mxu0 0.0
    %1470 = vmatpush1.msra.mxu0 0.0
    %1471 = vmatprep.subr.mxu0 0.0
    %1472 = vmatpush1.msra.mxu0 0.0
    %1473 = vmatprep.subr.mxu0 0.0
    %1474 = vmatpush1.msra.mxu0 0.0
    %1475 = vmatprep.subr.mxu0 0.0
    %1476 = vmatpush1.msra.mxu0 0.0
    %1477 = vmatprep.subr.mxu0 0.0
    %1478 = vmatpush1.msra.mxu0 0.0
    %1479 = vmatprep.subr.mxu0 0.0
    %1480 = vmatpush1.msra.mxu0 0.0
    %1481 = vmatprep.subr.mxu0 0.0
    %1482 = vmatpush1.msra.mxu0 0.0
    %1483 = vmatprep.subr.mxu0 0.0
    %1484 = vmatpush1.msra.mxu0 0.0
    %1485 = vmatprep.subr.mxu0 0.0
    %1486 = vmatpush1.msra.mxu0 0.0
    %1487 = vmatprep.subr.mxu0 0.0
    %1488 = vmatpush1.msra.mxu0 0.0
    %1489 = vmatprep.subr.mxu0 0.0
    %1490 = vmatpush1.msra.mxu0 0.0
    %1491 = vmatprep.subr.mxu0 0.0
    %1492 = vmatpush1.msra.mxu0 0.0
    %1493 = vmatprep.subr.mxu0 0.0
    %1494 = vmatpush1.msra.mxu0 0.0
    %1495 = vmatprep.subr.mxu0 0.0
    %1496 = vmatpush1.msra.mxu0 0.0
    %1497 = vmatprep.subr.mxu0 0.0
    %1498 = vmatpush1.msra.mxu0 0.0
    %1499 = vmatprep.subr.mxu0 0.0
    %1500 = vmatpush1.msra.mxu0 0.0
    %1501 = vmatprep.subr.mxu0 0.0
    %1502 = vmatpush1.msra.mxu0 0.0
    %1503 = vmatprep.subr.mxu0 0.0
    %1504 = vmatpush1.msra.mxu0 0.0
    %1505 = vmatprep.subr.mxu0 0.0
    %1506 = vmatpush1.msra.mxu0 0.0
    %1507 = vmatprep.subr.mxu0 0.0
    %1508 = vmatpush1.msra.mxu0 0.0
    %1509 = vmatprep.subr.mxu0 0.0
    %1510 = vmatpush1.msra.mxu0 0.0
    %1511 = vmatprep.subr.mxu0 0.0
    %1512 = vmatpush1.msra.mxu0 0.0
    %1513 = vmatprep.subr.mxu0 0.0
    %1514 = vmatpush1.msra.mxu0 0.0
    %1515 = vmatprep.subr.mxu0 0.0
    %1516 = vmatpush1.msra.mxu0 0.0
    %1517 = vmatprep.subr.mxu0 0.0
    %1518 = vmatpush1.msra.mxu0 0.0
    %1519 = vmatprep.subr.mxu0 0.0
    %1520 = vmatpush1.msra.mxu0 0.0
    %1521 = vmatprep.subr.mxu0 0.0
    %1522 = vmatpush1.msra.mxu0 0.0
    %1523 = vmatprep.mubr.f32.mxu0 0.0
    %1524 = vmatmul.mubr.f32.gmra.mrb[0].mxu0 %v1457
    %v1525 = vpop.f32.mrb[0].mxu0
    %v1526 = vadd.f32 0.0, %v1525
    %v1527 = vpop.f32.mrb[0].mxu0
    %1528 = vdwg.mxu0
    %1531 = vrot.lane.b32.xlu0 %v1070, 8
    %v1532 = vpop.permute.xlu0 %1531
    %1533 = vrot.lane.b32.xlu0 %v1374, 8
    %v1534 = vpop.permute.xlu0 %1533
    %1539 = vrot.lane.b32.xlu0 %v1146, 16
    %v1540 = vpop.permute.xlu0 %1539
    %1541 = vrot.lane.b32.xlu0 %v1450, 16
    %v1542 = vpop.permute.xlu0 %1541
    %1547 = vrot.lane.b32.xlu0 %v1222, 24
    %v1548 = vpop.permute.xlu0 %1547
    %1549 = vrot.lane.b32.xlu0 %v1526, 24
    %v1550 = vpop.permute.xlu0 %1549
    %v1553 = vsel %vm226, %v994, %v1532
    %v1554 = vsel %vm226, %v1298, %v1534
    %vm1555 = vcmask 130048
    %v1556 = vsel %vm1555, %v1553, %v1540
    %v1557 = vsel %vm1555, %v1554, %v1542
    %vm1558 = vcmask 195584
    %v1559 = vsel %vm1558, %v1556, %v1548
    %v1560 = vsel %vm1558, %v1557, %v1550
    %1565 = vrot.lane.b32.xlu0 %v62, 32
    %v1566 = vpop.permute.xlu0 %1565
    %1567 = vrot.lane.b32.xlu0 %v63, 32
    %v1568 = vpop.permute.xlu0 %1567
    %1569 = vrot.lane.b32.xlu0 %v64, 32
    %v1570 = vpop.permute.xlu0 %1569
    %1571 = vrot.lane.b32.xlu0 %v65, 32
    %v1572 = vpop.permute.xlu0 %1571
    %1578 = vrot.lane.b32.xlu0 %v191, 32
    %v1579 = vpop.permute.xlu0 %1578
    %v1582 = vsel %vm67, %v1559, 0
    %v1585 = vsel %vm67, %v1560, 0
    %1587 = vmatprep.subr.mxu0 0.0
    %1588 = vmatpush1.msra.mxu0 %v1566
    %1589 = vmatprep.subr.mxu0 0.0
    %1590 = vmatpush1.msra.mxu0 %v1568
    %1591 = vmatprep.subr.mxu0 0.0
    %1592 = vmatpush1.msra.mxu0 %v1570
    %1593 = vmatprep.subr.mxu0 0.0
    %1594 = vmatpush1.msra.mxu0 %v1572
    %1595 = vmatprep.subr.mxu0 0.0
    %1596 = vmatpush1.msra.mxu0 0.0
    %1597 = vmatprep.subr.mxu0 0.0
    %1598 = vmatpush1.msra.mxu0 0.0
    %1599 = vmatprep.subr.mxu0 0.0
    %1600 = vmatpush1.msra.mxu0 0.0
    %1601 = vmatprep.subr.mxu0 0.0
    %1602 = vmatpush1.msra.mxu0 0.0
    %1603 = vmatprep.subr.mxu0 0.0
    %1604 = vmatpush1.msra.mxu0 0.0
    %1605 = vmatprep.subr.mxu0 0.0
    %1606 = vmatpush1.msra.mxu0 0.0
    %1607 = vmatprep.subr.mxu0 0.0
    %1608 = vmatpush1.msra.mxu0 0.0
    %1609 = vmatprep.subr.mxu0 0.0
    %1610 = vmatpush1.msra.mxu0 0.0
    %1611 = vmatprep.subr.mxu0 0.0
    %1612 = vmatpush1.msra.mxu0 0.0
    %1613 = vmatprep.subr.mxu0 0.0
    %1614 = vmatpush1.msra.mxu0 0.0
    %1615 = vmatprep.subr.mxu0 0.0
    %1616 = vmatpush1.msra.mxu0 0.0
    %1617 = vmatprep.subr.mxu0 0.0
    %1618 = vmatpush1.msra.mxu0 0.0
    %1619 = vmatprep.subr.mxu0 0.0
    %1620 = vmatpush1.msra.mxu0 0.0
    %1621 = vmatprep.subr.mxu0 0.0
    %1622 = vmatpush1.msra.mxu0 0.0
    %1623 = vmatprep.subr.mxu0 0.0
    %1624 = vmatpush1.msra.mxu0 0.0
    %1625 = vmatprep.subr.mxu0 0.0
    %1626 = vmatpush1.msra.mxu0 0.0
    %1627 = vmatprep.subr.mxu0 0.0
    %1628 = vmatpush1.msra.mxu0 0.0
    %1629 = vmatprep.subr.mxu0 0.0
    %1630 = vmatpush1.msra.mxu0 0.0
    %1631 = vmatprep.subr.mxu0 0.0
    %1632 = vmatpush1.msra.mxu0 0.0
    %1633 = vmatprep.subr.mxu0 0.0
    %1634 = vmatpush1.msra.mxu0 0.0
    %1635 = vmatprep.subr.mxu0 0.0
    %1636 = vmatpush1.msra.mxu0 0.0
    %1637 = vmatprep.subr.mxu0 0.0
    %1638 = vmatpush1.msra.mxu0 0.0
    %1639 = vmatprep.subr.mxu0 0.0
    %1640 = vmatpush1.msra.mxu0 0.0
    %1641 = vmatprep.subr.mxu0 0.0
    %1642 = vmatpush1.msra.mxu0 0.0
    %1643 = vmatprep.subr.mxu0 0.0
    %1644 = vmatpush1.msra.mxu0 0.0
    %1645 = vmatprep.subr.mxu0 0.0
    %1646 = vmatpush1.msra.mxu0 0.0
    %1647 = vmatprep.subr.mxu0 0.0
    %1648 = vmatpush1.msra.mxu0 0.0
    %1649 = vmatprep.subr.mxu0 0.0
    %1650 = vmatpush1.msra.mxu0 0.0
    %1651 = vmatprep.mubr.f32.mxu0 0.0
    %1652 = vmatmul.mubr.f32.gmra.mrb[0].mxu0 %v1582
    %v1653 = vpop.f32.mrb[0].mxu0
    %v1654 = vadd.f32 %v1579, %v1653
    %v1655 = vpop.f32.mrb[0].mxu0
    %1656 = vmatprep.mubr.f32.mxu0 0.0
    %1657 = vmatmul.mubr.f32.gmra.mrb[0].mxu0 %v1585
    %v1658 = vpop.f32.mrb[0].mxu0
    %v1659 = vadd.f32 %v1579, %v1658
    %v1660 = vpop.f32.mrb[0].mxu0
    %1661 = vdwg.mxu0
    %v1662 = vadd.f32 %v105, %v1654
    %v1663 = vadd.f32 %v106, %v1659
    %v1664 = vsel %vm67, %v1662, 0.0
    %1665 = vadd.xlane.f32.xlu0 %v1664
    %v1666 = vpop.xlane.xlu0 %1665
    %v1667 = vsel %vm67, %v1663, 0.0
    %1668 = vadd.xlane.f32.xlu0 %v1667
    %v1669 = vpop.xlane.xlu0 %1668
    %v1670 = vmul.f32 %v1666, %v74
    %v1671 = vmul.f32 %v1669, %v74
    %v1672 = vsub.f32 %v1662, %v1670
    %v1673 = vsub.f32 %v1663, %v1671
    %v1674 = vmul.f32 %v1672, %v1672
    %v1675 = vmul.f32 %v1673, %v1673
    %v1676 = vsel %vm67, %v1674, 0.0
    %1677 = vadd.xlane.f32.xlu0 %v1676
    %v1678 = vpop.xlane.xlu0 %1677
    %v1679 = vsel %vm67, %v1675, 0.0
    %1680 = vadd.xlane.f32.xlu0 %v1679
    %v1681 = vpop.xlane.xlu0 %1680
    %v1682 = vmul.f32 %v1678, %v74
    %v1683 = vmul.f32 %v1681, %v74
    %v1684 = vadd.f32 %v1682, 1e-05
    %v1685 = vadd.f32 %v1683, 1e-05
    %v1686 = vrsqrt.pop %v1684
    %v1687 = vrsqrt.pop %v1685
    %v1688 = vmul.f32 %v1672, %v1686
    %v1689 = vmul.f32 %v1673, %v1687
    %1690 = vrot.lane.b32.xlu0 %v98, 64
    %v1691 = vpop.permute.xlu0 %1690
    %v1693 = vmul.f32 %v1688, %v1691
    %v1694 = vmul.f32 %v1689, %v1691
    %1695 = vrot.lane.b32.xlu0 %v98, 32
    %v1696 = vpop.permute.xlu0 %1695
    %v1698 = vadd.f32 %v1693, %v1696
    %v1699 = vadd.f32 %v1694, %v1696
    %v1700 = vld [vmem:[#allocation5] sm:$0xff]
    %v1701 = vld [vmem:[#allocation5 + $0x8] sm:$0xff]
    %v1702 = vld [vmem:[#allocation5 + $0x10] sm:$0xff]
    %v1703 = vld [vmem:[#allocation5 + $0x18] sm:$0xff]
    %v1704 = vlaneseq
    %v1705 = vshrl.u32 %v1704, 7
    %v1706 = vsub.s32 2, %v1705
    %v1707 = vrot.slane %v66, %v1706
    %v1709 = vsel %vm67, %v1698, 0
    %v1712 = vsel %vm67, %v1699, 0
    %1714 = vmatprep.subr.mxu0 0.0
    %1715 = vmatpush1.msra.mxu0 %v1700
    %1716 = vmatprep.subr.mxu0 0.0
    %1717 = vmatpush1.msra.mxu0 %v1701
    %1718 = vmatprep.subr.mxu0 0.0
    %1719 = vmatpush1.msra.mxu0 %v1702
    %1720 = vmatprep.subr.mxu0 0.0
    %1721 = vmatpush1.msra.mxu0 %v1703
    %1722 = vmatprep.subr.mxu0 0.0
    %1723 = vmatpush1.msra.mxu0 0.0
    %1724 = vmatprep.subr.mxu0 0.0
    %1725 = vmatpush1.msra.mxu0 0.0
    %1726 = vmatprep.subr.mxu0 0.0
    %1727 = vmatpush1.msra.mxu0 0.0
    %1728 = vmatprep.subr.mxu0 0.0
    %1729 = vmatpush1.msra.mxu0 0.0
    %1730 = vmatprep.subr.mxu0 0.0
    %1731 = vmatpush1.msra.mxu0 0.0
    %1732 = vmatprep.subr.mxu0 0.0
    %1733 = vmatpush1.msra.mxu0 0.0
    %1734 = vmatprep.subr.mxu0 0.0
    %1735 = vmatpush1.msra.mxu0 0.0
    %1736 = vmatprep.subr.mxu0 0.0
    %1737 = vmatpush1.msra.mxu0 0.0
    %1738 = vmatprep.subr.mxu0 0.0
    %1739 = vmatpush1.msra.mxu0 0.0
    %1740 = vmatprep.subr.mxu0 0.0
    %1741 = vmatpush1.msra.mxu0 0.0
    %1742 = vmatprep.subr.mxu0 0.0
    %1743 = vmatpush1.msra.mxu0 0.0
    %1744 = vmatprep.subr.mxu0 0.0
    %1745 = vmatpush1.msra.mxu0 0.0
    %1746 = vmatprep.subr.mxu0 0.0
    %1747 = vmatpush1.msra.mxu0 0.0
    %1748 = vmatprep.subr.mxu0 0.0
    %1749 = vmatpush1.msra.mxu0 0.0
    %1750 = vmatprep.subr.mxu0 0.0
    %1751 = vmatpush1.msra.mxu0 0.0
    %1752 = vmatprep.subr.mxu0 0.0
    %1753 = vmatpush1.msra.mxu0 0.0
    %1754 = vmatprep.subr.mxu0 0.0
    %1755 = vmatpush1.msra.mxu0 0.0
    %1756 = vmatprep.subr.mxu0 0.0
    %1757 = vmatpush1.msra.mxu0 0.0
    %1758 = vmatprep.subr.mxu0 0.0
    %1759 = vmatpush1.msra.mxu0 0.0
    %1760 = vmatprep.subr.mxu0 0.0
    %1761 = vmatpush1.msra.mxu0 0.0
    %1762 = vmatprep.subr.mxu0 0.0
    %1763 = vmatpush1.msra.mxu0 0.0
    %1764 = vmatprep.subr.mxu0 0.0
    %1765 = vmatpush1.msra.mxu0 0.0
    %1766 = vmatprep.subr.mxu0 0.0
    %1767 = vmatpush1.msra.mxu0 0.0
    %1768 = vmatprep.subr.mxu0 0.0
    %1769 = vmatpush1.msra.mxu0 0.0
    %1770 = vmatprep.subr.mxu0 0.0
    %1771 = vmatpush1.msra.mxu0 0.0
    %1772 = vmatprep.subr.mxu0 0.0
    %1773 = vmatpush1.msra.mxu0 0.0
    %1774 = vmatprep.subr.mxu0 0.0
    %1775 = vmatpush1.msra.mxu0 0.0
    %1776 = vmatprep.subr.mxu0 0.0
    %1777 = vmatpush1.msra.mxu0 0.0
    %1778 = vmatprep.mubr.f32.mxu0 0.0
    %1779 = vmatmul.mubr.f32.gmra.mrb[0].mxu0 %v1709
    %v1780 = vpop.f32.mrb[0].mxu0
    %v1781 = vadd.f32 %v1707, %v1780
    %v1782 = vpop.f32.mrb[0].mxu0
    %1783 = vmatprep.mubr.f32.mxu0 0.0
    %1784 = vmatmul.mubr.f32.gmra.mrb[0].mxu0 %v1712
    %v1785 = vpop.f32.mrb[0].mxu0
    %v1786 = vadd.f32 %v1707, %v1785
    %v1787 = vpop.f32.mrb[0].mxu0
    %1788 = vdwg.mxu0
    %v1789 = vmul.f32 %v1781, 0.5
    %v1790 = vmul.f32 %v1786, 0.5
    %v1791 = vmul.f32 %v1781, 0.70710677
    %v1792 = vmul.f32 %v1786, 0.70710677
    %v1793 = verf.f32.pop %v1791
    %v1794 = verf.f32.pop %v1792
    %v1795 = vadd.f32 %v1793, 1.0
    %v1796 = vadd.f32 %v1794, 1.0
    %v1797 = vmul.f32 %v1789, %v1795
    %v1798 = vmul.f32 %v1790, %v1796
    %v1799 = vld [vmem:[%s4] sm:$0xff]
    %v1800 = vld [vmem:[%s4 + $0x8] sm:$0xff]
    %v1801 = vld [vmem:[%s4 + $0x10] sm:$0xff]
    %v1802 = vld [vmem:[%s4 + $0x18] sm:$0xff]
    %v1803 = vld [vmem:[%s4 + $0x20] sm:$0xff]
    %v1804 = vld [vmem:[%s4 + $0x28] sm:$0xff]
    %v1805 = vld [vmem:[%s4 + $0x30] sm:$0xff]
    %v1806 = vld [vmem:[%s4 + $0x38] sm:$0xff]
    %1808 = vrot.lane.b32.xlu0 %v1707, 64
    %v1809 = vpop.permute.xlu0 %1808
    %vm1811 = vcmask 523264
    %v1813 = vsel %vm1811, %v1797, 0
    %v1816 = vsel %vm1811, %v1798, 0
    %1818 = vmatprep.subr.mxu0 0.0
    %1819 = vmatpush1.msra.mxu0 %v1799
    %1820 = vmatprep.subr.mxu0 0.0
    %1821 = vmatpush1.msra.mxu0 %v1800
    %1822 = vmatprep.subr.mxu0 0.0
    %1823 = vmatpush1.msra.mxu0 %v1801
    %1824 = vmatprep.subr.mxu0 0.0
    %1825 = vmatpush1.msra.mxu0 %v1802
    %1826 = vmatprep.subr.mxu0 0.0
    %1827 = vmatpush1.msra.mxu0 %v1803
    %1828 = vmatprep.subr.mxu0 0.0
    %1829 = vmatpush1.msra.mxu0 %v1804
    %1830 = vmatprep.subr.mxu0 0.0
    %1831 = vmatpush1.msra.mxu0 %v1805
    %1832 = vmatprep.subr.mxu0 0.0
    %1833 = vmatpush1.msra.mxu0 %v1806
    %1834 = vmatprep.subr.mxu0 0.0
    %1835 = vmatpush1.msra.mxu0 0.0
    %1836 = vmatprep.subr.mxu0 0.0
    %1837 = vmatpush1.msra.mxu0 0.0
    %1838 = vmatprep.subr.mxu0 0.0
    %1839 = vmatpush1.msra.mxu0 0.0
    %1840 = vmatprep.subr.mxu0 0.0
    %1841 = vmatpush1.msra.mxu0 0.0
    %1842 = vmatprep.subr.mxu0 0.0
    %1843 = vmatpush1.msra.mxu0 0.0
    %1844 = vmatprep.subr.mxu0 0.0
    %1845 = vmatpush1.msra.mxu0 0.0
    %1846 = vmatprep.subr.mxu0 0.0
    %1847 = vmatpush1.msra.mxu0 0.0
    %1848 = vmatprep.subr.mxu0 0.0
    %1849 = vmatpush1.msra.mxu0 0.0
    %1850 = vmatprep.subr.mxu0 0.0
    %1851 = vmatpush1.msra.mxu0 0.0
    %1852 = vmatprep.subr.mxu0 0.0
    %1853 = vmatpush1.msra.mxu0 0.0
    %1854 = vmatprep.subr.mxu0 0.0
    %1855 = vmatpush1.msra.mxu0 0.0
    %1856 = vmatprep.subr.mxu0 0.0
    %1857 = vmatpush1.msra.mxu0 0.0
    %1858 = vmatprep.subr.mxu0 0.0
    %1859 = vmatpush1.msra.mxu0 0.0
    %1860 = vmatprep.subr.mxu0 0.0
    %1861 = vmatpush1.msra.mxu0 0.0
    %1862 = vmatprep.subr.mxu0 0.0
    %1863 = vmatpush1.msra.mxu0 0.0
    %1864 = vmatprep.subr.mxu0 0.0
    %1865 = vmatpush1.msra.mxu0 0.0
    %1866 = vmatprep.subr.mxu0 0.0
    %1867 = vmatpush1.msra.mxu0 0.0
    %1868 = vmatprep.subr.mxu0 0.0
    %1869 = vmatpush1.msra.mxu0 0.0
    %1870 = vmatprep.subr.mxu0 0.0
    %1871 = vmatpush1.msra.mxu0 0.0
    %1872 = vmatprep.subr.mxu0 0.0
    %1873 = vmatpush1.msra.mxu0 0.0
    %1874 = vmatprep.subr.mxu0 0.0
    %1875 = vmatpush1.msra.mxu0 0.0
    %1876 = vmatprep.subr.mxu0 0.0
    %1877 = vmatpush1.msra.mxu0 0.0
    %1878 = vmatprep.subr.mxu0 0.0
    %1879 = vmatpush1.msra.mxu0 0.0
    %1880 = vmatprep.subr.mxu0 0.0
    %1881 = vmatpush1.msra.mxu0 0.0
    %1882 = vmatprep.mubr.f32.mxu0 0.0
    %1883 = vmatmul.mubr.f32.gmra.mrb[0].mxu0 %v1813
    %v1884 = vpop.f32.mrb[0].mxu0
    %v1885 = vadd.f32 %v1809, %v1884
    %v1886 = vpop.f32.mrb[0].mxu0
    %1887 = vmatprep.mubr.f32.mxu0 0.0
    %1888 = vmatmul.mubr.f32.gmra.mrb[0].mxu0 %v1816
    %v1889 = vpop.f32.mrb[0].mxu0
    %v1890 = vadd.f32 %v1809, %v1889
    %v1891 = vpop.f32.mrb[0].mxu0
    %1892 = vdwg.mxu0
    %v1893 = vadd.f32 %v1698, %v1885
    %v1894 = vadd.f32 %v1699, %v1890
    %1895 = vst.msk [vmem:[#allocation7] sm:$0xff] %vm67, %v1893
    %1896 = vst.msk [vmem:[#allocation7 + $0x8] sm:$0xff] %vm67, %v1894
    // Predicated region
    $region34: #{tpu_custom_call.1} parent=1 // pred_check
      _
    $region35: #{tpu_custom_call.1} parent=1 // pred_check_branch
      %1898 = sbr.rel (0) target = $region37
    $region36: #{tpu_custom_call.1} parent=1 // pred_region
      %s1900 = ssub.s32 256, 256
      %1901 = vsyncadd [#allocation4], %s1900
      %s1902 = sshll.u32 [#allocation7], 4
      %s1903 = int_to_ptr.vmem [resolvable:$true] %s1902
      %1908 = dma.vmem_to_hbm [thread:$0]  %s1903, 256, %s6, [#allocation4], 128, 128, 8
    $region37: #{tpu_custom_call.1} parent=1 // pred_fallthru
      _
    // Predicated region
    $region38: #{tpu_custom_call.1} parent=1 // pred_check
      _
    $region39: #{tpu_custom_call.1} parent=1 // pred_check_branch
      %1910 = sbr.rel (0) target = $region41
    $region40: #{tpu_custom_call.1} parent=1 // pred_region
      %1911 = dma.done [#allocation4], 256
    $region41: #{tpu_custom_call.1} parent=1 // pred_fallthru
      _
    %1912 = vsyncpa [#allocation3], 1
    %1913 = vsyncpa [#allocation6], 1
    %1914 = vsyncpa [#allocation4], 1

</llo_original>
